<compile_context>
chip_gen: v6e
topology: v6e:2x2x1
jax: 0.10.0
libtpu: 0.0.40
codegen_flags: <defaults>
</compile_context>

<pallas_src>
import functools

import jax
import jax.numpy as jnp
from jax.experimental import pallas as pl
from jax.experimental.pallas import tpu as pltpu


def _round_up(x, m):
    return (x + m - 1) // m * m


def _device_kind():
    try:
        return jax.devices()[0].device_kind.lower()
    except Exception:
        return ""


def _num_tensorcores():
    # v7x has 2 TensorCores per chip; v5e/v6e have 1.
    return 2 if "v7" in _device_kind() else 1


def _vmem_cap_bytes():
    # Keep headroom under v7x's 64 MiB/TC VMEM; v5e/v6e have 128 MiB.
    return (56 << 20) if "v7" in _device_kind() else (100 << 20)


# ---------------------------------------------------------------------------
# Pallas kernel: 3x3 conv (9 shifted matmuls over phase images) + folded BN
# bias [+ fused 1x1-conv shortcut] [+ ReLU], f32 accumulation.
# Grid = (batch, row tiles); both axes are "parallel" (no reduction axis --
# the weights are fully resident in VMEM).
# ---------------------------------------------------------------------------
def _conv3x3_bn_kernel(x_ref, w_ref, b_ref, *refs, taps, th, Wo, has_shortcut,
                       apply_relu):
    if has_shortcut:
        xs_ref, ws_ref, o_ref = refs
    else:
        (o_ref,) = refs

    cin = x_ref.shape[-1]
    cout = o_ref.shape[-1]
    rows = th * Wo
    r0 = pl.program_id(1) * th                    # first output row of this tile

    acc = jnp.zeros((rows, cout), jnp.float32)
    for t, (ph, qh, qw) in enumerate(taps):       # static 9-tap loop
        # Contiguous (th, Wo, Cin) window of phase image `ph`, shifted by the
        # tap offsets (qh, qw); the whole phase image is resident in VMEM.
        slab = x_ref[0, ph, pl.ds(r0 + qh, th), pl.ds(qw, Wo), :]
        acc = acc + jnp.dot(slab.reshape(rows, cin), w_ref[t],
                            preferred_element_type=jnp.float32)

    acc = acc + b_ref[...].astype(jnp.float32)    # folded BN (+ shortcut) bias

    if has_shortcut:                              # fused 1x1 conv / identity
        acc = acc + jnp.dot(xs_ref[0], ws_ref[...],
                            preferred_element_type=jnp.float32)

    if apply_relu:
        acc = jnp.maximum(acc, 0.0)
    o_ref[...] = acc[None].astype(o_ref.dtype)


# ---------------------------------------------------------------------------
# Wrapper around pallas_call
# ---------------------------------------------------------------------------
def _choose_row_tile(Ho, Wo, batch, target_rows=1024):
    """Row-tile height: a divisor of Ho (no ragged tiles) whose (rows, C)
    block is sublane-friendly, targeting ~1K matmul rows per grid step."""
    divs = [d for d in range(1, Ho + 1) if Ho % d == 0]
    cands = [d for d in divs if (d * Wo) % 16 == 0] or [Ho]
    good = [d for d in cands if d * Wo <= target_rows]
    th = max(good) if good else min(cands)
    # Only multi-TensorCore chips (v7x) need >= 2 grid steps to split work.
    if _num_tensorcores() >= 2 and batch * (Ho // th) < 2:
        smaller = [d for d in cands if d < th]
        if smaller:
            th = max(smaller)
    return th


def _vmem_limit_bytes(block_list):
    """Derive vmem_limit from the actual (layout-padded) buffer sizes."""
    total = 0
    for shape, dtype, bufs in block_list:
        esize = jnp.dtype(dtype).itemsize
        sub = 8 if esize >= 4 else (16 if esize == 2 else 32)
        dims = list(shape)
        if dims:
            dims[-1] = _round_up(dims[-1], 128)
        if len(dims) >= 2:
            dims[-2] = _round_up(dims[-2], sub)
        n = 1
        for d in dims:
            n *= d
        total += n * esize * bufs
    return max(32 << 20, min(int(total * 1.5) + (8 << 20), _vmem_cap_bytes()))


def _conv3x3_bn(xph, w9, bias, *, stride, Ho, Wo, shortcut=None,
                apply_relu=True, out_dtype=jnp.bfloat16):
    """act( conv3x3(x) + bias [+ xs @ ws] ) -> (N, Ho*Wo, Cout).

    xph:  (N, stride**2, Hq, Wq, Cin) bf16  phase images (see _make_phases)
    w9:   (9, Cin, Cout) bf16               BN-folded conv weights
    bias: (1, Cout) f32                     BN-folded bias (+ shortcut bias)
    shortcut: optional (xs (N, Ho*Wo, Cs) bf16, ws (Cs, Cout) bf16)
    """
    N, P, Hq, Wq, Cin = xph.shape
    assert P == stride * stride
    Cout = w9.shape[-1]
    M = Ho * Wo
    th = _choose_row_tile(Ho, Wo, N)
    n_row = Ho // th
    taps = tuple(((kh % stride) * stride + (kw % stride),
                  kh // stride, kw // stride)
                 for kh in range(3) for kw in range(3))

    in_specs = [
        # Whole padded phase image of one batch element.  Its block index only
        # depends on n, so it is DMA'd once per image and reused across tiles.
        pl.BlockSpec((1, P, Hq, Wq, Cin), lambda n, r: (n, 0, 0, 0, 0)),
        # Weights / bias: block index never changes -> DMA'd exactly once.
        pl.BlockSpec((9, Cin, Cout), lambda n, r: (0, 0, 0)),
        pl.BlockSpec((1, Cout), lambda n, r: (0, 0)),
    ]
    args = [xph, w9, bias]
    blocks = [((1, P, Hq, Wq, Cin), xph.dtype, 2),
              ((9, Cin, Cout), w9.dtype, 2),
              ((1, Cout), bias.dtype, 2),
              ((th * Wo, Cout), jnp.float32, 3),      # accumulator + temps
              ((1, th * Wo, Cout), out_dtype, 2)]

    has_shortcut = shortcut is not None
    if has_shortcut:
        xs, ws = shortcut
        Cs = xs.shape[-1]
        in_specs += [pl.BlockSpec((1, th * Wo, Cs), lambda n, r: (n, r, 0)),
                     pl.BlockSpec((Cs, Cout), lambda n, r: (0, 0))]
        args += [xs, ws]
        blocks += [((1, th * Wo, Cs), xs.dtype, 2), ((Cs, Cout), ws.dtype, 2)]

    kernel = functools.partial(_conv3x3_bn_kernel, taps=taps, th=th, Wo=Wo,
                               has_shortcut=has_shortcut,
                               apply_relu=apply_relu)

    return pl.pallas_call(
        kernel,
        out_shape=jax.ShapeDtypeStruct((N, M, Cout), out_dtype),
        grid_spec=pltpu.PrefetchScalarGridSpec(
            num_scalar_prefetch=0,
            grid=(N, n_row),
            in_specs=in_specs,
            out_specs=pl.BlockSpec((1, th * Wo, Cout), lambda n, r: (n, r, 0)),
        ),
        compiler_params=pltpu.CompilerParams(
            dimension_semantics=("parallel", "parallel"),
            vmem_limit_bytes=_vmem_limit_bytes(blocks),
        ),
    )(*args)


# ---------------------------------------------------------------------------
# Glue: phase (space-to-depth) decomposition, BN folding, params, forward.
# ---------------------------------------------------------------------------
def _make_phases(x, stride, Ho, Wo):
    """Zero-pad spatially by 1 and split into stride**2 phase images so every
    3x3 tap is a contiguous (Ho, Wo) window of one phase.

    x: (N, H, W, C) -> (N, stride**2, Hq, Wq, C)
    """
    xp = jnp.pad(x, ((0, 0), (1, 1), (1, 1), (0, 0)))
    Hq = Ho + (2 if stride == 1 else 1)
    Wq = Wo + (2 if stride == 1 else 1)
    phases = []
    for ph in range(stride):
        for pw in range(stride):
            sub = xp[:, ph::stride, pw::stride, :][:, :Hq, :Wq, :]
            dh, dw = Hq - sub.shape[1], Wq - sub.shape[2]
            if dh or dw:
                sub = jnp.pad(sub, ((0, 0), (0, dh), (0, dw), (0, 0)))
            phases.append(sub)
    if len(phases) == 1:
        return phases[0][:, None]
    return jnp.stack(phases, axis=1)


def _fold_bn(w, conv_bias, gamma, beta, mean, var, eps=1e-5):
    """Fold eval-mode BN into conv weights (..., Cout) and an f32 bias."""
    scale = gamma / jnp.sqrt(var + eps)
    w_f = (w.astype(jnp.float32) * scale).astype(jnp.bfloat16)
    b_f = (beta + scale * (conv_bias - mean)).astype(jnp.float32)
    return w_f, b_f


def init_params(key, cin, cout, stride):
    ks = jax.random.split(key, 20)
    w = lambda k, s: 0.1 * jax.random.normal(k, s, jnp.float32)
    p = dict(
        w1=w(ks[0], (3, 3, cin, cout)), b1=w(ks[1], (cout,)),
        g1=1.0 + 0.1 * jax.random.normal(ks[2], (cout,)), be1=w(ks[3], (cout,)),
        m1=w(ks[4], (cout,)), v1=0.5 + jax.random.uniform(ks[5], (cout,)),
        w2=w(ks[6], (3, 3, cout, cout)), b2=w(ks[7], (cout,)),
        g2=1.0 + 0.1 * jax.random.normal(ks[8], (cout,)), be2=w(ks[9], (cout,)),
        m2=w(ks[10], (cout,)), v2=0.5 + jax.random.uniform(ks[11], (cout,)),
    )
    if stride != 1 or cin != cout:
        p.update(
            ws=w(ks[12], (1, 1, cin, cout)), bs=w(ks[13], (cout,)),
            gs=1.0 + 0.1 * jax.random.normal(ks[14], (cout,)),
            bes=w(ks[15], (cout,)),
            ms=w(ks[16], (cout,)), vs=0.5 + jax.random.uniform(ks[17], (cout,)),
        )
    return p


def residual_block1_forward(x_nchw, params, stride):
    assert stride in (1, 2)
    x = jnp.transpose(x_nchw, (0, 2, 3, 1)).astype(jnp.bfloat16)   # NHWC bf16
    N, H, W, Cin = x.shape
    Cout = params["w1"].shape[-1]
    has_proj = (stride != 1) or (Cin != Cout)
    Ho = (H - 1) // stride + 1
    Wo = (W - 1) // stride + 1
    M = Ho * Wo

    # conv1 (3x3, stride) + BN1 + ReLU  -- fused Pallas kernel
    w1f, b1f = _fold_bn(params["w1"], params["b1"], params["g1"],
                        params["be1"], params["m1"], params["v1"])
    out1 = _conv3x3_bn(_make_phases(x, stride, Ho, Wo),
                       w1f.reshape(9, Cin, Cout), b1f.reshape(1, Cout),
                       stride=stride, Ho=Ho, Wo=Wo,
                       apply_relu=True, out_dtype=jnp.bfloat16)     # (N, M, C)
    out1_img = out1.reshape(N, Ho, Wo, Cout)

    # Shortcut operands: fused into the conv2 kernel as a 1x1 matmul.
    if has_proj:
        wsf, bsf = _fold_bn(params["ws"].reshape(Cin, Cout), params["bs"],
                            params["gs"], params["bes"], params["ms"],
                            params["vs"])
        xs = x[:, ::stride, ::stride, :].reshape(N, M, Cin)
    else:
        wsf = jnp.eye(Cout, dtype=jnp.bfloat16)
        bsf = jnp.zeros((Cout,), jnp.float32)
        xs = x.reshape(N, M, Cin)

    # conv2 (3x3) + BN2 + shortcut add + ReLU  -- fused Pallas kernel
    w2f, b2f = _fold_bn(params["w2"], params["b2"], params["g2"],
                        params["be2"], params["m2"], params["v2"])
    out = _conv3x3_bn(_make_phases(out1_img, 1, Ho, Wo),
                      w2f.reshape(9, Cout, Cout),
                      (b2f + bsf).reshape(1, Cout),
                      stride=1, Ho=Ho, Wo=Wo,
                      shortcut=(xs, wsf), apply_relu=True,
                      out_dtype=jnp.float32)                         # (N, M, C)

    out = out.reshape(N, Ho, Wo, Cout)
    return jnp.transpose(out, (0, 3, 1, 2)).astype(jnp.float32)      # NCHW f32


# ---------------------------------------------------------------------------
# Pure-JAX reference (eval-mode BN, f32) for correctness check
# ---------------------------------------------------------------------------
def ref_forward(x_nchw, params, stride):
    x = jnp.transpose(x_nchw, (0, 2, 3, 1))
    Cin = x.shape[-1]
    Cout = params["w1"].shape[-1]
    has_proj = (stride != 1) or (Cin != Cout)

    def conv(xx, w, b, s, pad):
        y = jax.lax.conv_general_dilated(
            xx, w, (s, s), [(pad, pad), (pad, pad)],
            dimension_numbers=("NHWC", "HWIO", "NHWC"))
        return y + b

    def bn(y, g, be, m, v):
        return (y - m) / jnp.sqrt(v + 1e-5) * g + be

    out = jax.nn.relu(bn(conv(x, params["w1"], params["b1"], stride, 1),
                         params["g1"], params["be1"], params["m1"], params["v1"]))
    out = bn(conv(out, params["w2"], params["b2"], 1, 1),
             params["g2"], params["be2"], params["m2"], params["v2"])
    if has_proj:
        sc = bn(conv(x, params["ws"], params["bs"], stride, 0),
                params["gs"], params["bes"], params["ms"], params["vs"])
    else:
        sc = x
    out = jax.nn.relu(out + sc)
    return jnp.transpose(out, (0, 3, 1, 2))


# ---------------------------------------------------------------------------
if __name__ == "__main__":
    key = jax.random.PRNGKey(0)
    k_x, k_p, k_x2, k_p2 = jax.random.split(key, 4)

    # bf16 MXU operands -> relaxed tolerance vs the f32 reference.
    ATOL = RTOL = 5e-2

    # Config 1: projection shortcut (stride=2, channel expansion)
    N, Cin, H, W = 2, 4, 16, 16
    Cout, stride = 8, 2
    x = jax.random.normal(k_x, (N, Cin, H, W), jnp.float32)
    params = init_params(k_p, Cin, Cout, stride)

    out = jax.block_until_ready(residual_block1_forward(x, params, stride))
    ref = ref_forward(x, params, stride)
    assert out.shape == (N, Cout, H // stride, W // stride), out.shape
    if not jnp.allclose(out, ref, atol=ATOL, rtol=RTOL):
        raise AssertionError(
            f"mismatch (proj), max abs err = {jnp.max(jnp.abs(out - ref))}")

    # Config 2: identity shortcut (stride=1, Cin == Cout)
    x2 = jax.random.normal(k_x2, (N, Cout, H, W), jnp.float32)
    params2 = init_params(k_p2, Cout, Cout, 1)
    out2 = jax.block_until_ready(residual_block1_forward(x2, params2, 1))
    ref2 = ref_forward(x2, params2, 1)
    assert out2.shape == (N, Cout, H, W), out2.shape
    if not jnp.allclose(out2, ref2, atol=ATOL, rtol=RTOL):
        raise AssertionError(
            f"mismatch (identity), max abs err = {jnp.max(jnp.abs(out2 - ref2))}")

    print("KERNEL_OK")
</pallas_src>

<mosaic_0001>
module attributes {stable_mosaic.version = 11 : i64} {
  func.func @_conv3x3_bn_kernel(%arg0: i32, %arg1: i32, %arg2: memref<1x4x9x9x4xbf16, #tpu.memory_space<vmem>>, %arg3: memref<9x4x8xbf16, #tpu.memory_space<vmem>>, %arg4: memref<1x8xf32, #tpu.memory_space<vmem>>, %arg5: memref<1x64x8xbf16, #tpu.memory_space<vmem>>) attributes {dimension_semantics = [#tpu.dimension_semantics<parallel>, #tpu.dimension_semantics<parallel>], iteration_bounds = array<i64: 2, 1>, scalar_prefetch = 0 : i64, scratch_operands = 0 : i64, tpu.core_type = #tpu.core_type<tc>, window_params = [{transform_indices = @transform_0, window_bounds = array<i64: 1, 4, 9, 9, 4>}, {pipeline_mode = #tpu.pipeline_mode<synchronous>, transform_indices = @transform_1, window_bounds = array<i64: 9, 4, 8>}, {pipeline_mode = #tpu.pipeline_mode<synchronous>, transform_indices = @transform_2, window_bounds = array<i64: 1, 8>}, {transform_indices = @transform_3, window_bounds = array<i64: 1, 64, 8>}]} {
    %c8_i32 = arith.constant 8 : i32
    %0 = arith.muli %arg1, %c8_i32 : i32
    %cst = arith.constant 0.000000e+00 : f32
    %1 = vector.broadcast %cst : f32 to vector<64x8xf32>
    %c0_i32 = arith.constant 0 : i32
    %2 = arith.addi %0, %c0_i32 : i32
    %c0 = arith.constant 0 : index
    %c0_0 = arith.constant 0 : index
    %3 = arith.index_cast %2 : i32 to index
    %c0_1 = arith.constant 0 : index
    %c0_2 = arith.constant 0 : index
    %4 = vector.load %arg2[%c0, %c0_0, %3, %c0_1, %c0_2] : memref<1x4x9x9x4xbf16, #tpu.memory_space<vmem>>, vector<1x1x8x8x4xbf16>
    %5 = vector.shape_cast %4 : vector<1x1x8x8x4xbf16> to vector<8x8x4xbf16>
    %6 = vector.shape_cast %5 : vector<8x8x4xbf16> to vector<64x4xbf16>
    %c0_3 = arith.constant 0 : index
    %c0_4 = arith.constant 0 : index
    %c0_5 = arith.constant 0 : index
    %7 = vector.load %arg3[%c0_3, %c0_4, %c0_5] : memref<9x4x8xbf16, #tpu.memory_space<vmem>>, vector<1x4x8xbf16>
    %8 = vector.shape_cast %7 : vector<1x4x8xbf16> to vector<4x8xbf16>
    %cst_6 = arith.constant dense<0.000000e+00> : vector<64x8xf32>
    %9 = tpu.matmul %6, %8, %cst_6 {dimension_numbers = #tpu.dot_dimension_numbers<[1], [0], [0], [1], [0, 0, 1, 1], [], []>} : vector<64x4xbf16>, vector<4x8xbf16>, vector<64x8xf32> -> vector<64x8xf32>
    %10 = arith.addf %1, %9 : vector<64x8xf32>
    %c0_i32_7 = arith.constant 0 : i32
    %11 = arith.addi %0, %c0_i32_7 : i32
    %c0_8 = arith.constant 0 : index
    %c1 = arith.constant 1 : index
    %12 = arith.index_cast %11 : i32 to index
    %c0_9 = arith.constant 0 : index
    %c0_10 = arith.constant 0 : index
    %13 = vector.load %arg2[%c0_8, %c1, %12, %c0_9, %c0_10] : memref<1x4x9x9x4xbf16, #tpu.memory_space<vmem>>, vector<1x1x8x8x4xbf16>
    %14 = vector.shape_cast %13 : vector<1x1x8x8x4xbf16> to vector<8x8x4xbf16>
    %15 = vector.shape_cast %14 : vector<8x8x4xbf16> to vector<64x4xbf16>
    %c1_11 = arith.constant 1 : index
    %c0_12 = arith.constant 0 : index
    %c0_13 = arith.constant 0 : index
    %16 = vector.load %arg3[%c1_11, %c0_12, %c0_13] : memref<9x4x8xbf16, #tpu.memory_space<vmem>>, vector<1x4x8xbf16>
    %17 = vector.shape_cast %16 : vector<1x4x8xbf16> to vector<4x8xbf16>
    %cst_14 = arith.constant dense<0.000000e+00> : vector<64x8xf32>
    %18 = tpu.matmul %15, %17, %cst_14 {dimension_numbers = #tpu.dot_dimension_numbers<[1], [0], [0], [1], [0, 0, 1, 1], [], []>} : vector<64x4xbf16>, vector<4x8xbf16>, vector<64x8xf32> -> vector<64x8xf32>
    %19 = arith.addf %10, %18 : vector<64x8xf32>
    %c0_i32_15 = arith.constant 0 : i32
    %20 = arith.addi %0, %c0_i32_15 : i32
    %c0_16 = arith.constant 0 : index
    %c0_17 = arith.constant 0 : index
    %21 = arith.index_cast %20 : i32 to index
    %c1_18 = arith.constant 1 : index
    %c0_19 = arith.constant 0 : index
    %22 = vector.load %arg2[%c0_16, %c0_17, %21, %c1_18, %c0_19] : memref<1x4x9x9x4xbf16, #tpu.memory_space<vmem>>, vector<1x1x8x8x4xbf16>
    %23 = vector.shape_cast %22 : vector<1x1x8x8x4xbf16> to vector<8x8x4xbf16>
    %24 = vector.shape_cast %23 : vector<8x8x4xbf16> to vector<64x4xbf16>
    %c2 = arith.constant 2 : index
    %c0_20 = arith.constant 0 : index
    %c0_21 = arith.constant 0 : index
    %25 = vector.load %arg3[%c2, %c0_20, %c0_21] : memref<9x4x8xbf16, #tpu.memory_space<vmem>>, vector<1x4x8xbf16>
    %26 = vector.shape_cast %25 : vector<1x4x8xbf16> to vector<4x8xbf16>
    %cst_22 = arith.constant dense<0.000000e+00> : vector<64x8xf32>
    %27 = tpu.matmul %24, %26, %cst_22 {dimension_numbers = #tpu.dot_dimension_numbers<[1], [0], [0], [1], [0, 0, 1, 1], [], []>} : vector<64x4xbf16>, vector<4x8xbf16>, vector<64x8xf32> -> vector<64x8xf32>
    %28 = arith.addf %19, %27 : vector<64x8xf32>
    %c0_i32_23 = arith.constant 0 : i32
    %29 = arith.addi %0, %c0_i32_23 : i32
    %c0_24 = arith.constant 0 : index
    %c2_25 = arith.constant 2 : index
    %30 = arith.index_cast %29 : i32 to index
    %c0_26 = arith.constant 0 : index
    %c0_27 = arith.constant 0 : index
    %31 = vector.load %arg2[%c0_24, %c2_25, %30, %c0_26, %c0_27] : memref<1x4x9x9x4xbf16, #tpu.memory_space<vmem>>, vector<1x1x8x8x4xbf16>
    %32 = vector.shape_cast %31 : vector<1x1x8x8x4xbf16> to vector<8x8x4xbf16>
    %33 = vector.shape_cast %32 : vector<8x8x4xbf16> to vector<64x4xbf16>
    %c3 = arith.constant 3 : index
    %c0_28 = arith.constant 0 : index
    %c0_29 = arith.constant 0 : index
    %34 = vector.load %arg3[%c3, %c0_28, %c0_29] : memref<9x4x8xbf16, #tpu.memory_space<vmem>>, vector<1x4x8xbf16>
    %35 = vector.shape_cast %34 : vector<1x4x8xbf16> to vector<4x8xbf16>
    %cst_30 = arith.constant dense<0.000000e+00> : vector<64x8xf32>
    %36 = tpu.matmul %33, %35, %cst_30 {dimension_numbers = #tpu.dot_dimension_numbers<[1], [0], [0], [1], [0, 0, 1, 1], [], []>} : vector<64x4xbf16>, vector<4x8xbf16>, vector<64x8xf32> -> vector<64x8xf32>
    %37 = arith.addf %28, %36 : vector<64x8xf32>
    %c0_i32_31 = arith.constant 0 : i32
    %38 = arith.addi %0, %c0_i32_31 : i32
    %c0_32 = arith.constant 0 : index
    %c3_33 = arith.constant 3 : index
    %39 = arith.index_cast %38 : i32 to index
    %c0_34 = arith.constant 0 : index
    %c0_35 = arith.constant 0 : index
    %40 = vector.load %arg2[%c0_32, %c3_33, %39, %c0_34, %c0_35] : memref<1x4x9x9x4xbf16, #tpu.memory_space<vmem>>, vector<1x1x8x8x4xbf16>
    %41 = vector.shape_cast %40 : vector<1x1x8x8x4xbf16> to vector<8x8x4xbf16>
    %42 = vector.shape_cast %41 : vector<8x8x4xbf16> to vector<64x4xbf16>
    %c4 = arith.constant 4 : index
    %c0_36 = arith.constant 0 : index
    %c0_37 = arith.constant 0 : index
    %43 = vector.load %arg3[%c4, %c0_36, %c0_37] : memref<9x4x8xbf16, #tpu.memory_space<vmem>>, vector<1x4x8xbf16>
    %44 = vector.shape_cast %43 : vector<1x4x8xbf16> to vector<4x8xbf16>
    %cst_38 = arith.constant dense<0.000000e+00> : vector<64x8xf32>
    %45 = tpu.matmul %42, %44, %cst_38 {dimension_numbers = #tpu.dot_dimension_numbers<[1], [0], [0], [1], [0, 0, 1, 1], [], []>} : vector<64x4xbf16>, vector<4x8xbf16>, vector<64x8xf32> -> vector<64x8xf32>
    %46 = arith.addf %37, %45 : vector<64x8xf32>
    %c0_i32_39 = arith.constant 0 : i32
    %47 = arith.addi %0, %c0_i32_39 : i32
    %c0_40 = arith.constant 0 : index
    %c2_41 = arith.constant 2 : index
    %48 = arith.index_cast %47 : i32 to index
    %c1_42 = arith.constant 1 : index
    %c0_43 = arith.constant 0 : index
    %49 = vector.load %arg2[%c0_40, %c2_41, %48, %c1_42, %c0_43] : memref<1x4x9x9x4xbf16, #tpu.memory_space<vmem>>, vector<1x1x8x8x4xbf16>
    %50 = vector.shape_cast %49 : vector<1x1x8x8x4xbf16> to vector<8x8x4xbf16>
    %51 = vector.shape_cast %50 : vector<8x8x4xbf16> to vector<64x4xbf16>
    %c5 = arith.constant 5 : index
    %c0_44 = arith.constant 0 : index
    %c0_45 = arith.constant 0 : index
    %52 = vector.load %arg3[%c5, %c0_44, %c0_45] : memref<9x4x8xbf16, #tpu.memory_space<vmem>>, vector<1x4x8xbf16>
    %53 = vector.shape_cast %52 : vector<1x4x8xbf16> to vector<4x8xbf16>
    %cst_46 = arith.constant dense<0.000000e+00> : vector<64x8xf32>
    %54 = tpu.matmul %51, %53, %cst_46 {dimension_numbers = #tpu.dot_dimension_numbers<[1], [0], [0], [1], [0, 0, 1, 1], [], []>} : vector<64x4xbf16>, vector<4x8xbf16>, vector<64x8xf32> -> vector<64x8xf32>
    %55 = arith.addf %46, %54 : vector<64x8xf32>
    %c1_i32 = arith.constant 1 : i32
    %56 = arith.addi %0, %c1_i32 : i32
    %c0_47 = arith.constant 0 : index
    %c0_48 = arith.constant 0 : index
    %57 = arith.index_cast %56 : i32 to index
    %c0_49 = arith.constant 0 : index
    %c0_50 = arith.constant 0 : index
    %58 = vector.load %arg2[%c0_47, %c0_48, %57, %c0_49, %c0_50] : memref<1x4x9x9x4xbf16, #tpu.memory_space<vmem>>, vector<1x1x8x8x4xbf16>
    %59 = vector.shape_cast %58 : vector<1x1x8x8x4xbf16> to vector<8x8x4xbf16>
    %60 = vector.shape_cast %59 : vector<8x8x4xbf16> to vector<64x4xbf16>
    %c6 = arith.constant 6 : index
    %c0_51 = arith.constant 0 : index
    %c0_52 = arith.constant 0 : index
    %61 = vector.load %arg3[%c6, %c0_51, %c0_52] : memref<9x4x8xbf16, #tpu.memory_space<vmem>>, vector<1x4x8xbf16>
    %62 = vector.shape_cast %61 : vector<1x4x8xbf16> to vector<4x8xbf16>
    %cst_53 = arith.constant dense<0.000000e+00> : vector<64x8xf32>
    %63 = tpu.matmul %60, %62, %cst_53 {dimension_numbers = #tpu.dot_dimension_numbers<[1], [0], [0], [1], [0, 0, 1, 1], [], []>} : vector<64x4xbf16>, vector<4x8xbf16>, vector<64x8xf32> -> vector<64x8xf32>
    %64 = arith.addf %55, %63 : vector<64x8xf32>
    %c1_i32_54 = arith.constant 1 : i32
    %65 = arith.addi %0, %c1_i32_54 : i32
    %c0_55 = arith.constant 0 : index
    %c1_56 = arith.constant 1 : index
    %66 = arith.index_cast %65 : i32 to index
    %c0_57 = arith.constant 0 : index
    %c0_58 = arith.constant 0 : index
    %67 = vector.load %arg2[%c0_55, %c1_56, %66, %c0_57, %c0_58] : memref<1x4x9x9x4xbf16, #tpu.memory_space<vmem>>, vector<1x1x8x8x4xbf16>
    %68 = vector.shape_cast %67 : vector<1x1x8x8x4xbf16> to vector<8x8x4xbf16>
    %69 = vector.shape_cast %68 : vector<8x8x4xbf16> to vector<64x4xbf16>
    %c7 = arith.constant 7 : index
    %c0_59 = arith.constant 0 : index
    %c0_60 = arith.constant 0 : index
    %70 = vector.load %arg3[%c7, %c0_59, %c0_60] : memref<9x4x8xbf16, #tpu.memory_space<vmem>>, vector<1x4x8xbf16>
    %71 = vector.shape_cast %70 : vector<1x4x8xbf16> to vector<4x8xbf16>
    %cst_61 = arith.constant dense<0.000000e+00> : vector<64x8xf32>
    %72 = tpu.matmul %69, %71, %cst_61 {dimension_numbers = #tpu.dot_dimension_numbers<[1], [0], [0], [1], [0, 0, 1, 1], [], []>} : vector<64x4xbf16>, vector<4x8xbf16>, vector<64x8xf32> -> vector<64x8xf32>
    %73 = arith.addf %64, %72 : vector<64x8xf32>
    %c1_i32_62 = arith.constant 1 : i32
    %74 = arith.addi %0, %c1_i32_62 : i32
    %c0_63 = arith.constant 0 : index
    %c0_64 = arith.constant 0 : index
    %75 = arith.index_cast %74 : i32 to index
    %c1_65 = arith.constant 1 : index
    %c0_66 = arith.constant 0 : index
    %76 = vector.load %arg2[%c0_63, %c0_64, %75, %c1_65, %c0_66] : memref<1x4x9x9x4xbf16, #tpu.memory_space<vmem>>, vector<1x1x8x8x4xbf16>
    %77 = vector.shape_cast %76 : vector<1x1x8x8x4xbf16> to vector<8x8x4xbf16>
    %78 = vector.shape_cast %77 : vector<8x8x4xbf16> to vector<64x4xbf16>
    %c8 = arith.constant 8 : index
    %c0_67 = arith.constant 0 : index
    %c0_68 = arith.constant 0 : index
    %79 = vector.load %arg3[%c8, %c0_67, %c0_68] : memref<9x4x8xbf16, #tpu.memory_space<vmem>>, vector<1x4x8xbf16>
    %80 = vector.shape_cast %79 : vector<1x4x8xbf16> to vector<4x8xbf16>
    %cst_69 = arith.constant dense<0.000000e+00> : vector<64x8xf32>
    %81 = tpu.matmul %78, %80, %cst_69 {dimension_numbers = #tpu.dot_dimension_numbers<[1], [0], [0], [1], [0, 0, 1, 1], [], []>} : vector<64x4xbf16>, vector<4x8xbf16>, vector<64x8xf32> -> vector<64x8xf32>
    %82 = arith.addf %73, %81 : vector<64x8xf32>
    %c0_70 = arith.constant 0 : index
    %c0_71 = arith.constant 0 : index
    %83 = vector.load %arg4[%c0_70, %c0_71] : memref<1x8xf32, #tpu.memory_space<vmem>>, vector<1x8xf32>
    %84 = vector.broadcast %83 : vector<1x8xf32> to vector<64x8xf32>
    %85 = arith.addf %82, %84 : vector<64x8xf32>
    %cst_72 = arith.constant 0.000000e+00 : f32
    %86 = vector.broadcast %cst_72 : f32 to vector<64x8xf32>
    %87 = arith.maximumf %85, %86 : vector<64x8xf32>
    %88 = vector.shape_cast %87 : vector<64x8xf32> to vector<1x64x8xf32>
    %89 = arith.truncf %88 : vector<1x64x8xf32> to vector<1x64x8xbf16>
    %c0_73 = arith.constant 0 : index
    %c0_74 = arith.constant 0 : index
    %c0_75 = arith.constant 0 : index
    %90 = vector.load %arg5[%c0_73, %c0_74, %c0_75] : memref<1x64x8xbf16, #tpu.memory_space<vmem>>, vector<1x64x8xbf16>
    tpu.vector_store %arg5[%c0_73, %c0_74, %c0_75], %89 {strides = array<i32>} : memref<1x64x8xbf16, #tpu.memory_space<vmem>>, vector<1x64x8xbf16>,
    return
  }
  func.func @transform_0(%arg0: i32, %arg1: i32) -> (i32, i32, i32, i32, i32) {
    %c0_i32 = arith.constant 0 : i32
    %c0_i32_0 = arith.constant 0 : i32
    %c0_i32_1 = arith.constant 0 : i32
    %c0_i32_2 = arith.constant 0 : i32
    %c0_i32_3 = arith.constant 0 : i32
    return %arg0, %c0_i32, %c0_i32_0, %c0_i32_1, %c0_i32_2 : i32, i32, i32, i32, i32
  }
  func.func @transform_1(%arg0: i32, %arg1: i32) -> (i32, i32, i32) {
    %c0_i32 = arith.constant 0 : i32
    %c0_i32_0 = arith.constant 0 : i32
    %c0_i32_1 = arith.constant 0 : i32
    %c0_i32_2 = arith.constant 0 : i32
    return %c0_i32, %c0_i32_0, %c0_i32_1 : i32, i32, i32
  }
  func.func @transform_2(%arg0: i32, %arg1: i32) -> (i32, i32) {
    %c0_i32 = arith.constant 0 : i32
    %c0_i32_0 = arith.constant 0 : i32
    %c0_i32_1 = arith.constant 0 : i32
    return %c0_i32, %c0_i32_0 : i32, i32
  }
  func.func @transform_3(%arg0: i32, %arg1: i32) -> (i32, i32, i32) {
    %c0_i32 = arith.constant 0 : i32
    %c0_i32_0 = arith.constant 0 : i32
    return %arg0, %arg1, %c0_i32 : i32, i32, i32
  }
}

</mosaic_0001>

<llo_original>
// kernel: tpu_custom_call.1
$region0: #{tpu_custom_call.1}
  #allocation0 [shape = 'u32[]', space=smem, size = 0x4, offset = 0x4, fixed_abs, tag = 'smem constant byte address 0x4 - core index']
  #allocation1 [shape = 'u32[144,128]{1,0:T(1,128)}', space=vmem, size = 0x12000, scoped, tag = 'internal scratch']
  %s0 = inlined_call_operand.vmem [shape: bf16[2,4,9,9,4], index: 0, kind: input, shape index: {}]
  %s1 = inlined_call_operand.vmem [shape: bf16[9,4,8], index: 1, kind: input, shape index: {}]
  %s2 = inlined_call_operand.vmem [shape: f32[1,8], index: 2, kind: input, shape index: {}]
  %s3 = inlined_call_operand.vmem [shape: bf16[2,64,8], index: 3, kind: output, shape index: {}]
  %s4 = sld [smem:[#allocation0]]
  $region45: #{tpu_custom_call.1} parent=0
    _
  %s6 = ssub.s32 1, %s4
  %s7 = scalar_select 0, %s6, %s4
  loop: start=0, step=1, limit=4
  $region2: #{tpu_custom_call.1} parent=0 // loop_pre_header
    _
  $region3: #{tpu_custom_call.1} parent=0 // loop_header
    %s9 = sphi 0, %s13
    %p10 = scmp.ge.s32.totalorder %s9, 4
    %s16 = sphi 0, %s28
    %s17 = sphi 0, %s24
    %s18 = sphi 0, %s16
    %s19 = sphi 0, %s17
    %s20 = sphi 0, %s18
    %s21 = sphi 0, %s19
    %s31 = sphi 0, %s33
    %s34 = sphi 0, %s31
    %s35 = sphi 0, %s34
    %s51 = sphi 0, %s35
    %s55 = sphi 0, %s55
    %s57 = sphi 0, %s55
    %s58 = sphi 0, %s57
    %s72 = sphi 0, %s58
    %s76 = sphi 0, %s76
    %s78 = sphi 0, %s76
    %s79 = sphi 0, %s78
    %s93 = sphi 0, %s79
    %s101 = sphi 0, %s103
    %s104 = sphi 0, %s101
    %s105 = sphi 0, %s104
    %s121 = sphi 0, %s105
  $region4: #{tpu_custom_call.1} parent=0 // loop_header_branch
    %12 = sbr.rel (%p10) target = $region8
  $region5: #{tpu_custom_call.1} parent=0 // loop_body
    %s14 = ssub.s32 %s9, 1
    %s15 = ssub.s32 %s9, 2
    %s22 = sadd.s32 1, %s17
    %p23 = scmp.ge.s32.totalorder %s22, 1
    %s24 = scalar_select %p23, 0, %s22
    %s25 = sadd.s32 1, %s16
    %s26 = scalar_select %p23, %s25, %s16
    %p27 = scmp.ge.s32.totalorder %s26, 2
    %s28 = scalar_select %p27, 0, %s26
    %s29 = ssub.s32 %s16, %s28
    %p30 = scmp.eq.s32.totalorder %s29, 0
    %s32 = sadd.s32 %s31, 1
    %s33 = scalar_select %p30, %s31, %s32
    %p36 = pneg %p30
    %p37 = scmp.eq.s32.totalorder %s9, 1
    %p38 = por %p36, %p37
    %p39 = scmp.ne.s32.totalorder %s31, %s34
    %p40 = scmp.eq.s32.totalorder %s9, 0
    %p41 = por %p39, %p40
    %p42 = scmp.ne.s32.totalorder %s31, %s34
    %p43 = scmp.eq.s32.totalorder %s14, 1
    %p44 = por %p42, %p43
    %p45 = scmp.ne.s32.totalorder %s34, %s35
    %p46 = scmp.eq.s32.totalorder %s14, 0
    %p47 = por %p45, %p46
    %p48 = scmp.ne.s32.totalorder %s34, %s35
    %p49 = scmp.eq.s32.totalorder %s15, 1
    %p50 = por %p48, %p49
    %p52 = scmp.ne.s32.totalorder %s35, %s51
    %p53 = scmp.eq.s32.totalorder %s15, 0
    %p54 = por %p52, %p53
    %s56 = sadd.s32 %s55, 1
    %p59 = scmp.eq.s32.totalorder %s9, 1
    %p60 = scmp.ne.s32.totalorder %s55, %s57
    %p61 = scmp.eq.s32.totalorder %s9, 0
    %p62 = por %p60, %p61
    %p63 = scmp.ne.s32.totalorder %s55, %s57
    %p64 = scmp.eq.s32.totalorder %s14, 1
    %p65 = por %p63, %p64
    %p66 = scmp.ne.s32.totalorder %s57, %s58
    %p67 = scmp.eq.s32.totalorder %s14, 0
    %p68 = por %p66, %p67
    %p69 = scmp.ne.s32.totalorder %s57, %s58
    %p70 = scmp.eq.s32.totalorder %s15, 1
    %p71 = por %p69, %p70
    %p73 = scmp.ne.s32.totalorder %s58, %s72
    %p74 = scmp.eq.s32.totalorder %s15, 0
    %p75 = por %p73, %p74
    %s77 = sadd.s32 %s76, 1
    %p80 = scmp.eq.s32.totalorder %s9, 1
    %p81 = scmp.ne.s32.totalorder %s76, %s78
    %p82 = scmp.eq.s32.totalorder %s9, 0
    %p83 = por %p81, %p82
    %p84 = scmp.ne.s32.totalorder %s76, %s78
    %p85 = scmp.eq.s32.totalorder %s14, 1
    %p86 = por %p84, %p85
    %p87 = scmp.ne.s32.totalorder %s78, %s79
    %p88 = scmp.eq.s32.totalorder %s14, 0
    %p89 = por %p87, %p88
    %p90 = scmp.ne.s32.totalorder %s78, %s79
    %p91 = scmp.eq.s32.totalorder %s15, 1
    %p92 = por %p90, %p91
    %p94 = scmp.ne.s32.totalorder %s79, %s93
    %p95 = scmp.eq.s32.totalorder %s15, 0
    %p96 = por %p94, %p95
    %s97 = ssub.s32 %s16, %s28
    %s98 = ssub.s32 %s17, %s24
    %s99 = sor.u32 %s97, %s98
    %p100 = scmp.eq.s32.totalorder %s99, 0
    %s102 = sadd.s32 %s101, 1
    %s103 = scalar_select %p100, %s101, %s102
    %p106 = pneg %p100
    %p107 = scmp.eq.s32.totalorder %s9, 1
    %p108 = por %p106, %p107
    %p109 = scmp.ne.s32.totalorder %s101, %s104
    %p110 = scmp.eq.s32.totalorder %s9, 0
    %p111 = por %p109, %p110
    %p112 = scmp.ne.s32.totalorder %s101, %s104
    %p113 = scmp.eq.s32.totalorder %s14, 1
    %p114 = por %p112, %p113
    %p115 = scmp.ne.s32.totalorder %s104, %s105
    %p116 = scmp.eq.s32.totalorder %s14, 0
    %p117 = por %p115, %p116
    %p118 = scmp.ne.s32.totalorder %s104, %s105
    %p119 = scmp.eq.s32.totalorder %s15, 1
    %p120 = por %p118, %p119
    %p122 = scmp.ne.s32.totalorder %s105, %s121
    %p123 = scmp.eq.s32.totalorder %s15, 0
    %p124 = por %p122, %p123
    %p125 = scmp.le.s32.totalorder 1, %s9
    %p126 = scmp.lt.s32.totalorder %s9, 3
    %p127 = pnand %p125, %p126
    %p128 = pneg %p127
    // Predicated region
    $region9: #{tpu_custom_call.1} parent=5 // pred_check
      _
    $region10: #{tpu_custom_call.1} parent=5 // pred_check_branch
      %130 = sbr.rel (%p127) target = $region12
    $region11: #{tpu_custom_call.1} parent=5 // pred_region
      %s131 = ssub.s32 %s9, 1
      // Predicated region
      $region13: #{tpu_custom_call.1} parent=11 // pred_check
        %p132 = pneg %p68
      $region14: #{tpu_custom_call.1} parent=11 // pred_check_branch
        %134 = sbr.rel (%p132) target = $region16
      $region15: #{tpu_custom_call.1} parent=11 // pred_region
        _
      $region16: #{tpu_custom_call.1} parent=11 // pred_fallthru
        _
      // Predicated region
      $region17: #{tpu_custom_call.1} parent=11 // pred_check
        %p135 = pneg %p89
      $region18: #{tpu_custom_call.1} parent=11 // pred_check_branch
        %137 = sbr.rel (%p135) target = $region20
      $region19: #{tpu_custom_call.1} parent=11 // pred_region
        _
      $region20: #{tpu_custom_call.1} parent=11 // pred_fallthru
        _
    $region12: #{tpu_custom_call.1} parent=5 // pred_fallthru
      _
    %p138 = scmp.lt.s32.totalorder %s9, 2
    // Predicated region
    $region21: #{tpu_custom_call.1} parent=5 // pred_check
      %p139 = pneg %p138
    $region22: #{tpu_custom_call.1} parent=5 // pred_check_branch
      %141 = sbr.rel (%p139) target = $region24
    $region23: #{tpu_custom_call.1} parent=5 // pred_region
      // Predicated region
      $region25: #{tpu_custom_call.1} parent=23 // pred_check
        %p142 = pneg %p41
      $region26: #{tpu_custom_call.1} parent=23 // pred_check_branch
        %144 = sbr.rel (%p142) target = $region28
      $region27: #{tpu_custom_call.1} parent=23 // pred_region
        %p145 = scmp.lt.s32.totalorder %s16, 1
        %s146 = scalar_select %p145, %s16, 1
        %s147 = smul.addr %s146, 72
        %s148 = smul.addr %s147, 4
        %s149 = scalar_lea.vmem %s0, %s148
      $region28: #{tpu_custom_call.1} parent=23 // pred_fallthru
        _
    $region24: #{tpu_custom_call.1} parent=5 // pred_fallthru
      _
    %p150 = scmp.le.s32.totalorder 1, %s9
    %p151 = scmp.lt.s32.totalorder %s9, 3
    %p152 = pnand %p150, %p151
    %p153 = pneg %p152
    // Predicated region
    $region29: #{tpu_custom_call.1} parent=5 // pred_check
      _
    $region30: #{tpu_custom_call.1} parent=5 // pred_check_branch
      %155 = sbr.rel (%p152) target = $region32
    $region31: #{tpu_custom_call.1} parent=5 // pred_region
      %s156 = ssub.s32 %s9, 1
      %p157 = scmp.lt.s32.totalorder %s18, 1
      %s158 = scalar_select %p157, %s18, 1
      %s159 = smul.addr %s158, 72
      %s160 = smul.addr %s159, 4
      %s161 = scalar_lea.vmem %s0, %s160
      %p162 = pneg %p47
      %p163 = pneg %p44
      %p164 = pneg %p68
      %p165 = pneg %p65
      %p166 = pneg %p89
      %p167 = pneg %p86
      %p168 = pneg %p117
      %p169 = pneg %p114
      %s170 = smul.u32 8, %s19
      %p171 = scmp.lt.s32.totalorder %s18, 1
      %s172 = scalar_select %p171, %s18, 1
      %p173 = scmp.lt.s32.totalorder %s170, 7
      %s174 = scalar_select %p173, %s170, 7
      %s175 = smul.addr %s172, 8
      %s176 = sadd.s32 %s174, %s175
      %s177 = smul.addr %s176, 4
      %s178 = scalar_lea.vmem %s3, %s177
      %p179 = scmp.lt.s32.totalorder %s18, 1
      %s180 = scalar_select %p179, %s18, 1
      %s181 = smul.addr %s180, 72
      %s182 = smul.addr %s181, 4
      %s183 = scalar_lea.vmem %s0, %s182
      %s184 = smul.u32 8, %s19
      %p185 = scmp.lt.s32.totalorder %s18, 1
      %s186 = scalar_select %p185, %s18, 1
      %p187 = scmp.lt.s32.totalorder %s184, 7
      %s188 = scalar_select %p187, %s184, 7
      %s189 = smul.addr %s186, 8
      %s190 = sadd.s32 %s188, %s189
      %s191 = smul.addr %s190, 4
      %s192 = scalar_lea.vmem %s3, %s191
      %s193 = smul.u32 8, %s19
      %s195 = smul.u32 %s19, 8
      %s196 = smul.u32 %s195, 2
      %s197 = smul.addr %s196, 4
      %s198 = scalar_lea.vmem %s183, %s197
      %v199 = vld [vmem:[%s198] sm:$0xf]
      %v200 = vld [vmem:[%s198 + $0x8] sm:$0xf]
      %v201 = vld [vmem:[%s198 + $0x10] sm:$0xf]
      %v202 = vld [vmem:[%s198 + $0x18] sm:$0xf]
      %v203 = vld [vmem:[%s198 + $0x20] sm:$0xf]
      %v204 = vld [vmem:[%s198 + $0x28] sm:$0xf]
      %v205 = vld [vmem:[%s198 + $0x30] sm:$0xf]
      %v206 = vld [vmem:[%s198 + $0x38] sm:$0xf]
      %v207 = vld [vmem:[%s1] sm:$0x3]
      %s208 = sadd.s32 %s196, 18
      %s209 = smul.addr %s208, 4
      %s210 = scalar_lea.vmem %s183, %s209
      %v211 = vld [vmem:[%s210] sm:$0xf]
      %v212 = vld [vmem:[%s210 + $0x8] sm:$0xf]
      %v213 = vld [vmem:[%s210 + $0x10] sm:$0xf]
      %v214 = vld [vmem:[%s210 + $0x18] sm:$0xf]
      %v215 = vld [vmem:[%s210 + $0x20] sm:$0xf]
      %v216 = vld [vmem:[%s210 + $0x28] sm:$0xf]
      %v217 = vld [vmem:[%s210 + $0x30] sm:$0xf]
      %v218 = vld [vmem:[%s210 + $0x38] sm:$0xf]
      %s219 = scalar_lea.vmem %s1, 2
      %v220 = vld [vmem:[%s219] sm:$0x3]
      %v229 = vunpack.c.l.b16 %v211
      %v230 = vunpack.c.l.b16 %v212
      %v231 = vunpack.c.l.b16 %v213
      %v232 = vunpack.c.l.b16 %v214
      %v233 = vunpack.c.l.b16 %v215
      %v234 = vunpack.c.l.b16 %v216
      %v235 = vunpack.c.l.b16 %v217
      %v236 = vunpack.c.l.b16 %v218
      %v237 = vpack.c.b16 %v230, %v229
      %v238 = vpack.c.b16 %v232, %v231
      %v239 = vpack.c.b16 %v234, %v233
      %v240 = vpack.c.b16 %v236, %v235
      %vm241 = vcmask 31744
      %v243 = vsel %vm241, %v237, 0
      %v246 = vsel %vm241, %v238, 0
      %v249 = vsel %vm241, %v239, 0
      %v252 = vsel %vm241, %v240, 0
      %vm254 = vcmask 1041408
      %v256 = vsel %vm254, %v220, 0
      %258 = vmatprep.subr.bf16.mxu0 0
      %259 = vmatpush1.bf16.msra.mxu0 0
      %260 = vmatprep.subr.bf16.mxu0 0
      %261 = vmatpush1.bf16.msra.mxu0 0
      %262 = vmatprep.subr.bf16.mxu0 0
      %263 = vmatpush1.bf16.msra.mxu0 0
      %264 = vmatprep.subr.bf16.mxu0 0
      %265 = vmatpush1.bf16.msra.mxu0 0
      %266 = vmatprep.subr.bf16.mxu0 0
      %267 = vmatpush1.bf16.msra.mxu0 0
      %268 = vmatprep.subr.bf16.mxu0 0
      %269 = vmatpush1.bf16.msra.mxu0 0
      %270 = vmatprep.subr.bf16.mxu0 0
      %271 = vmatpush1.bf16.msra.mxu0 0
      %272 = vmatprep.subr.bf16.mxu0 0
      %273 = vmatpush1.bf16.msra.mxu0 %v256
      %274 = vmatprep.subr.bf16.mxu0 0
      %275 = vmatpush2.bf16.msra.mxu0 0
      %276 = vmatprep.subr.bf16.mxu0 0
      %277 = vmatpush2.bf16.msra.mxu0 0
      %278 = vmatprep.subr.bf16.mxu0 0
      %279 = vmatpush2.bf16.msra.mxu0 0
      %280 = vmatprep.subr.bf16.mxu0 0
      %281 = vmatpush2.bf16.msra.mxu0 0
      %282 = vmatprep.subr.bf16.mxu0 0
      %283 = vmatpush2.bf16.msra.mxu0 0
      %284 = vmatprep.subr.bf16.mxu0 0
      %285 = vmatpush2.bf16.msra.mxu0 0
      %286 = vmatprep.subr.bf16.mxu0 0
      %287 = vmatpush2.bf16.msra.mxu0 0
      %288 = vmatprep.subr.bf16.mxu0 0
      %289 = vmatpush2.bf16.msra.mxu0 0
      %290 = vmatprep.mubr.bf16.mxu0 0
      %291 = vmatmul.mubr.bf16.gmra.mxu0 %v243
      %v292 = vpop.f32.mrf.mxu0
      %v293 = vadd.f32 0.0, %v292
      %v294 = vpop.f32.mrf.mxu0
      %v295 = vpop.f32.mrf.mxu0
      %v296 = vadd.f32 0.0, %v295
      %v297 = vpop.f32.mrf.mxu0
      %298 = vmatprep.mubr.bf16.mxu0 0
      %299 = vmatmul.mubr.bf16.gmra.mxu0 %v246
      %v300 = vpop.f32.mrf.mxu0
      %v301 = vadd.f32 0.0, %v300
      %v302 = vpop.f32.mrf.mxu0
      %v303 = vpop.f32.mrf.mxu0
      %v304 = vadd.f32 0.0, %v303
      %v305 = vpop.f32.mrf.mxu0
      %306 = vmatprep.mubr.bf16.mxu0 0
      %307 = vmatmul.mubr.bf16.gmra.mxu0 %v249
      %v308 = vpop.f32.mrf.mxu0
      %v309 = vadd.f32 0.0, %v308
      %v310 = vpop.f32.mrf.mxu0
      %v311 = vpop.f32.mrf.mxu0
      %v312 = vadd.f32 0.0, %v311
      %v313 = vpop.f32.mrf.mxu0
      %314 = vmatprep.mubr.bf16.mxu0 0
      %315 = vmatmul.mubr.bf16.gmra.mxu0 %v252
      %v316 = vpop.f32.mrf.mxu0
      %v317 = vadd.f32 0.0, %v316
      %v318 = vpop.f32.mrf.mxu0
      %v319 = vpop.f32.mrf.mxu0
      %v320 = vadd.f32 0.0, %v319
      %v321 = vpop.f32.mrf.mxu0
      %322 = vdwg.mxu0
      %v331 = vunpack.c.l.b16 %v199
      %v332 = vunpack.c.l.b16 %v200
      %v333 = vunpack.c.l.b16 %v201
      %v334 = vunpack.c.l.b16 %v202
      %v335 = vunpack.c.l.b16 %v203
      %v336 = vunpack.c.l.b16 %v204
      %v337 = vunpack.c.l.b16 %v205
      %v338 = vunpack.c.l.b16 %v206
      %v339 = vpack.c.b16 %v332, %v331
      %v340 = vpack.c.b16 %v334, %v333
      %v341 = vpack.c.b16 %v336, %v335
      %v342 = vpack.c.b16 %v338, %v337
      %v344 = vsel %vm241, %v339, 0
      %v347 = vsel %vm241, %v340, 0
      %v350 = vsel %vm241, %v341, 0
      %v353 = vsel %vm241, %v342, 0
      %v356 = vsel %vm254, %v207, 0
      %358 = vmatprep.subr.bf16.mxu0 0
      %359 = vmatpush1.bf16.msra.mxu0 0
      %360 = vmatprep.subr.bf16.mxu0 0
      %361 = vmatpush1.bf16.msra.mxu0 0
      %362 = vmatprep.subr.bf16.mxu0 0
      %363 = vmatpush1.bf16.msra.mxu0 0
      %364 = vmatprep.subr.bf16.mxu0 0
      %365 = vmatpush1.bf16.msra.mxu0 0
      %366 = vmatprep.subr.bf16.mxu0 0
      %367 = vmatpush1.bf16.msra.mxu0 0
      %368 = vmatprep.subr.bf16.mxu0 0
      %369 = vmatpush1.bf16.msra.mxu0 0
      %370 = vmatprep.subr.bf16.mxu0 0
      %371 = vmatpush1.bf16.msra.mxu0 0
      %372 = vmatprep.subr.bf16.mxu0 0
      %373 = vmatpush1.bf16.msra.mxu0 %v356
      %374 = vmatprep.subr.bf16.mxu0 0
      %375 = vmatpush2.bf16.msra.mxu0 0
      %376 = vmatprep.subr.bf16.mxu0 0
      %377 = vmatpush2.bf16.msra.mxu0 0
      %378 = vmatprep.subr.bf16.mxu0 0
      %379 = vmatpush2.bf16.msra.mxu0 0
      %380 = vmatprep.subr.bf16.mxu0 0
      %381 = vmatpush2.bf16.msra.mxu0 0
      %382 = vmatprep.subr.bf16.mxu0 0
      %383 = vmatpush2.bf16.msra.mxu0 0
      %384 = vmatprep.subr.bf16.mxu0 0
      %385 = vmatpush2.bf16.msra.mxu0 0
      %386 = vmatprep.subr.bf16.mxu0 0
      %387 = vmatpush2.bf16.msra.mxu0 0
      %388 = vmatprep.subr.bf16.mxu0 0
      %389 = vmatpush2.bf16.msra.mxu0 0
      %390 = vmatprep.mubr.bf16.mxu0 0
      %391 = vmatmul.mubr.bf16.gmra.mxu0 %v344
      %v392 = vpop.f32.mrf.mxu0
      %v393 = vadd.f32 %v293, %v392
      %v394 = vpop.f32.mrf.mxu0
      %v395 = vpop.f32.mrf.mxu0
      %v396 = vadd.f32 %v296, %v395
      %v397 = vpop.f32.mrf.mxu0
      %398 = vmatprep.mubr.bf16.mxu0 0
      %399 = vmatmul.mubr.bf16.gmra.mxu0 %v347
      %v400 = vpop.f32.mrf.mxu0
      %v401 = vadd.f32 %v301, %v400
      %v402 = vpop.f32.mrf.mxu0
      %v403 = vpop.f32.mrf.mxu0
      %v404 = vadd.f32 %v304, %v403
      %v405 = vpop.f32.mrf.mxu0
      %406 = vmatprep.mubr.bf16.mxu0 0
      %407 = vmatmul.mubr.bf16.gmra.mxu0 %v350
      %v408 = vpop.f32.mrf.mxu0
      %v409 = vadd.f32 %v309, %v408
      %v410 = vpop.f32.mrf.mxu0
      %v411 = vpop.f32.mrf.mxu0
      %v412 = vadd.f32 %v312, %v411
      %v413 = vpop.f32.mrf.mxu0
      %414 = vmatprep.mubr.bf16.mxu0 0
      %415 = vmatmul.mubr.bf16.gmra.mxu0 %v353
      %v416 = vpop.f32.mrf.mxu0
      %v417 = vadd.f32 %v317, %v416
      %v418 = vpop.f32.mrf.mxu0
      %v419 = vpop.f32.mrf.mxu0
      %v420 = vadd.f32 %v320, %v419
      %v421 = vpop.f32.mrf.mxu0
      %422 = vdwg.mxu0
      %v423 = vld [vmem:[%s198] sm:$0xf]
      %v424 = vld [vmem:[%s198 + $0x4] sm:$0x1]
      %v425 = vld [vmem:[%s198 + $0x8] sm:$0xf]
      %v426 = vld [vmem:[%s198 + $0xc] sm:$0x1]
      %v427 = vld [vmem:[%s198 + $0x10] sm:$0xf]
      %v428 = vld [vmem:[%s198 + $0x14] sm:$0x1]
      %v429 = vld [vmem:[%s198 + $0x18] sm:$0xf]
      %v430 = vld [vmem:[%s198 + $0x1c] sm:$0x1]
      %v431 = vld [vmem:[%s198 + $0x20] sm:$0xf]
      %v432 = vld [vmem:[%s198 + $0x24] sm:$0x1]
      %v433 = vld [vmem:[%s198 + $0x28] sm:$0xf]
      %v434 = vld [vmem:[%s198 + $0x2c] sm:$0x1]
      %v435 = vld [vmem:[%s198 + $0x30] sm:$0xf]
      %v436 = vld [vmem:[%s198 + $0x34] sm:$0x1]
      %v437 = vld [vmem:[%s198 + $0x38] sm:$0xf]
      %v438 = vld [vmem:[%s198 + $0x3c] sm:$0x1]
      %vm439 = vsmask.f32 3328
      %vm440 = vsmask.f32 7440
      %vm441 = vmor %vm439, %vm440
      %v443 = vshrl.u32 %v423, 16
      %v445 = vrot.slane %v443, 4
      %v446 = vshll.u32 %v423, 16
      %v448 = vrot.slane %v446, 5
      %v449 = vor.u32 %v445, %v448
      %v450 = vrot.slane %v449, 4
      %v452 = vshll.u32 %v424, 16
      %v454 = vrot.slane %v452, 5
      %v455 = vsel %vm441, %v450, %v454
      %v457 = vshrl.u32 %v425, 16
      %v459 = vrot.slane %v457, 4
      %v460 = vshll.u32 %v425, 16
      %v462 = vrot.slane %v460, 5
      %v463 = vor.u32 %v459, %v462
      %v464 = vrot.slane %v463, 4
      %v466 = vshll.u32 %v426, 16
      %v468 = vrot.slane %v466, 5
      %v469 = vsel %vm441, %v464, %v468
      %v471 = vshrl.u32 %v427, 16
      %v473 = vrot.slane %v471, 4
      %v474 = vshll.u32 %v427, 16
      %v476 = vrot.slane %v474, 5
      %v477 = vor.u32 %v473, %v476
      %v478 = vrot.slane %v477, 4
      %v480 = vshll.u32 %v428, 16
      %v482 = vrot.slane %v480, 5
      %v483 = vsel %vm441, %v478, %v482
      %v485 = vshrl.u32 %v429, 16
      %v487 = vrot.slane %v485, 4
      %v488 = vshll.u32 %v429, 16
      %v490 = vrot.slane %v488, 5
      %v491 = vor.u32 %v487, %v490
      %v492 = vrot.slane %v491, 4
      %v494 = vshll.u32 %v430, 16
      %v496 = vrot.slane %v494, 5
      %v497 = vsel %vm441, %v492, %v496
      %v499 = vshrl.u32 %v431, 16
      %v501 = vrot.slane %v499, 4
      %v502 = vshll.u32 %v431, 16
      %v504 = vrot.slane %v502, 5
      %v505 = vor.u32 %v501, %v504
      %v506 = vrot.slane %v505, 4
      %v508 = vshll.u32 %v432, 16
      %v510 = vrot.slane %v508, 5
      %v511 = vsel %vm441, %v506, %v510
      %v513 = vshrl.u32 %v433, 16
      %v515 = vrot.slane %v513, 4
      %v516 = vshll.u32 %v433, 16
      %v518 = vrot.slane %v516, 5
      %v519 = vor.u32 %v515, %v518
      %v520 = vrot.slane %v519, 4
      %v522 = vshll.u32 %v434, 16
      %v524 = vrot.slane %v522, 5
      %v525 = vsel %vm441, %v520, %v524
      %v527 = vshrl.u32 %v435, 16
      %v529 = vrot.slane %v527, 4
      %v530 = vshll.u32 %v435, 16
      %v532 = vrot.slane %v530, 5
      %v533 = vor.u32 %v529, %v532
      %v534 = vrot.slane %v533, 4
      %v536 = vshll.u32 %v436, 16
      %v538 = vrot.slane %v536, 5
      %v539 = vsel %vm441, %v534, %v538
      %v541 = vshrl.u32 %v437, 16
      %v543 = vrot.slane %v541, 4
      %v544 = vshll.u32 %v437, 16
      %v546 = vrot.slane %v544, 5
      %v547 = vor.u32 %v543, %v546
      %v548 = vrot.slane %v547, 4
      %v550 = vshll.u32 %v438, 16
      %v552 = vrot.slane %v550, 5
      %v553 = vsel %vm441, %v548, %v552
      %s554 = scalar_lea.vmem %s1, 4
      %v555 = vld [vmem:[%s554] sm:$0x3]
      %v556 = vunpack.c.l.b16 %v455
      %v557 = vunpack.c.l.b16 %v469
      %v558 = vunpack.c.l.b16 %v483
      %v559 = vunpack.c.l.b16 %v497
      %v560 = vunpack.c.l.b16 %v511
      %v561 = vunpack.c.l.b16 %v525
      %v562 = vunpack.c.l.b16 %v539
      %v563 = vunpack.c.l.b16 %v553
      %v564 = vpack.c.b16 %v557, %v556
      %v565 = vpack.c.b16 %v559, %v558
      %v566 = vpack.c.b16 %v561, %v560
      %v567 = vpack.c.b16 %v563, %v562
      %v569 = vsel %vm241, %v564, 0
      %v572 = vsel %vm241, %v565, 0
      %v575 = vsel %vm241, %v566, 0
      %v578 = vsel %vm241, %v567, 0
      %v581 = vsel %vm254, %v555, 0
      %583 = vmatprep.subr.bf16.mxu0 0
      %584 = vmatpush1.bf16.msra.mxu0 0
      %585 = vmatprep.subr.bf16.mxu0 0
      %586 = vmatpush1.bf16.msra.mxu0 0
      %587 = vmatprep.subr.bf16.mxu0 0
      %588 = vmatpush1.bf16.msra.mxu0 0
      %589 = vmatprep.subr.bf16.mxu0 0
      %590 = vmatpush1.bf16.msra.mxu0 0
      %591 = vmatprep.subr.bf16.mxu0 0
      %592 = vmatpush1.bf16.msra.mxu0 0
      %593 = vmatprep.subr.bf16.mxu0 0
      %594 = vmatpush1.bf16.msra.mxu0 0
      %595 = vmatprep.subr.bf16.mxu0 0
      %596 = vmatpush1.bf16.msra.mxu0 0
      %597 = vmatprep.subr.bf16.mxu0 0
      %598 = vmatpush1.bf16.msra.mxu0 %v581
      %599 = vmatprep.subr.bf16.mxu0 0
      %600 = vmatpush2.bf16.msra.mxu0 0
      %601 = vmatprep.subr.bf16.mxu0 0
      %602 = vmatpush2.bf16.msra.mxu0 0
      %603 = vmatprep.subr.bf16.mxu0 0
      %604 = vmatpush2.bf16.msra.mxu0 0
      %605 = vmatprep.subr.bf16.mxu0 0
      %606 = vmatpush2.bf16.msra.mxu0 0
      %607 = vmatprep.subr.bf16.mxu0 0
      %608 = vmatpush2.bf16.msra.mxu0 0
      %609 = vmatprep.subr.bf16.mxu0 0
      %610 = vmatpush2.bf16.msra.mxu0 0
      %611 = vmatprep.subr.bf16.mxu0 0
      %612 = vmatpush2.bf16.msra.mxu0 0
      %613 = vmatprep.subr.bf16.mxu0 0
      %614 = vmatpush2.bf16.msra.mxu0 0
      %615 = vmatprep.mubr.bf16.mxu0 0
      %616 = vmatmul.mubr.bf16.gmra.mxu0 %v569
      %v617 = vpop.f32.mrf.mxu0
      %v618 = vadd.f32 0.0, %v617
      %v619 = vpop.f32.mrf.mxu0
      %v620 = vpop.f32.mrf.mxu0
      %v621 = vadd.f32 0.0, %v620
      %v622 = vpop.f32.mrf.mxu0
      %623 = vmatprep.mubr.bf16.mxu0 0
      %624 = vmatmul.mubr.bf16.gmra.mxu0 %v572
      %v625 = vpop.f32.mrf.mxu0
      %v626 = vadd.f32 0.0, %v625
      %v627 = vpop.f32.mrf.mxu0
      %v628 = vpop.f32.mrf.mxu0
      %v629 = vadd.f32 0.0, %v628
      %v630 = vpop.f32.mrf.mxu0
      %631 = vmatprep.mubr.bf16.mxu0 0
      %632 = vmatmul.mubr.bf16.gmra.mxu0 %v575
      %v633 = vpop.f32.mrf.mxu0
      %v634 = vadd.f32 0.0, %v633
      %v635 = vpop.f32.mrf.mxu0
      %v636 = vpop.f32.mrf.mxu0
      %v637 = vadd.f32 0.0, %v636
      %v638 = vpop.f32.mrf.mxu0
      %639 = vmatprep.mubr.bf16.mxu0 0
      %640 = vmatmul.mubr.bf16.gmra.mxu0 %v578
      %v641 = vpop.f32.mrf.mxu0
      %v642 = vadd.f32 0.0, %v641
      %v643 = vpop.f32.mrf.mxu0
      %v644 = vpop.f32.mrf.mxu0
      %v645 = vadd.f32 0.0, %v644
      %v646 = vpop.f32.mrf.mxu0
      %647 = vdwg.mxu0
      %v648 = vadd.f32 %v393, %v618
      %v649 = vadd.f32 %v396, %v621
      %v650 = vadd.f32 %v401, %v626
      %v651 = vadd.f32 %v404, %v629
      %v652 = vadd.f32 %v409, %v634
      %v653 = vadd.f32 %v412, %v637
      %v654 = vadd.f32 %v417, %v642
      %v655 = vadd.f32 %v420, %v645
      %s656 = sadd.s32 %s196, 36
      %s657 = smul.addr %s656, 4
      %s658 = scalar_lea.vmem %s183, %s657
      %v659 = vld [vmem:[%s658] sm:$0xf]
      %v660 = vld [vmem:[%s658 + $0x8] sm:$0xf]
      %v661 = vld [vmem:[%s658 + $0x10] sm:$0xf]
      %v662 = vld [vmem:[%s658 + $0x18] sm:$0xf]
      %v663 = vld [vmem:[%s658 + $0x20] sm:$0xf]
      %v664 = vld [vmem:[%s658 + $0x28] sm:$0xf]
      %v665 = vld [vmem:[%s658 + $0x30] sm:$0xf]
      %v666 = vld [vmem:[%s658 + $0x38] sm:$0xf]
      %s667 = scalar_lea.vmem %s1, 6
      %v668 = vld [vmem:[%s667] sm:$0x3]
      %v677 = vunpack.c.l.b16 %v659
      %v678 = vunpack.c.l.b16 %v660
      %v679 = vunpack.c.l.b16 %v661
      %v680 = vunpack.c.l.b16 %v662
      %v681 = vunpack.c.l.b16 %v663
      %v682 = vunpack.c.l.b16 %v664
      %v683 = vunpack.c.l.b16 %v665
      %v684 = vunpack.c.l.b16 %v666
      %v685 = vpack.c.b16 %v678, %v677
      %v686 = vpack.c.b16 %v680, %v679
      %v687 = vpack.c.b16 %v682, %v681
      %v688 = vpack.c.b16 %v684, %v683
      %v690 = vsel %vm241, %v685, 0
      %v693 = vsel %vm241, %v686, 0
      %v696 = vsel %vm241, %v687, 0
      %v699 = vsel %vm241, %v688, 0
      %v702 = vsel %vm254, %v668, 0
      %704 = vmatprep.subr.bf16.mxu0 0
      %705 = vmatpush1.bf16.msra.mxu0 0
      %706 = vmatprep.subr.bf16.mxu0 0
      %707 = vmatpush1.bf16.msra.mxu0 0
      %708 = vmatprep.subr.bf16.mxu0 0
      %709 = vmatpush1.bf16.msra.mxu0 0
      %710 = vmatprep.subr.bf16.mxu0 0
      %711 = vmatpush1.bf16.msra.mxu0 0
      %712 = vmatprep.subr.bf16.mxu0 0
      %713 = vmatpush1.bf16.msra.mxu0 0
      %714 = vmatprep.subr.bf16.mxu0 0
      %715 = vmatpush1.bf16.msra.mxu0 0
      %716 = vmatprep.subr.bf16.mxu0 0
      %717 = vmatpush1.bf16.msra.mxu0 0
      %718 = vmatprep.subr.bf16.mxu0 0
      %719 = vmatpush1.bf16.msra.mxu0 %v702
      %720 = vmatprep.subr.bf16.mxu0 0
      %721 = vmatpush2.bf16.msra.mxu0 0
      %722 = vmatprep.subr.bf16.mxu0 0
      %723 = vmatpush2.bf16.msra.mxu0 0
      %724 = vmatprep.subr.bf16.mxu0 0
      %725 = vmatpush2.bf16.msra.mxu0 0
      %726 = vmatprep.subr.bf16.mxu0 0
      %727 = vmatpush2.bf16.msra.mxu0 0
      %728 = vmatprep.subr.bf16.mxu0 0
      %729 = vmatpush2.bf16.msra.mxu0 0
      %730 = vmatprep.subr.bf16.mxu0 0
      %731 = vmatpush2.bf16.msra.mxu0 0
      %732 = vmatprep.subr.bf16.mxu0 0
      %733 = vmatpush2.bf16.msra.mxu0 0
      %734 = vmatprep.subr.bf16.mxu0 0
      %735 = vmatpush2.bf16.msra.mxu0 0
      %736 = vmatprep.mubr.bf16.mxu0 0
      %737 = vmatmul.mubr.bf16.gmra.mxu0 %v690
      %v738 = vpop.f32.mrf.mxu0
      %v739 = vadd.f32 0.0, %v738
      %v740 = vpop.f32.mrf.mxu0
      %v741 = vpop.f32.mrf.mxu0
      %v742 = vadd.f32 0.0, %v741
      %v743 = vpop.f32.mrf.mxu0
      %744 = vmatprep.mubr.bf16.mxu0 0
      %745 = vmatmul.mubr.bf16.gmra.mxu0 %v693
      %v746 = vpop.f32.mrf.mxu0
      %v747 = vadd.f32 0.0, %v746
      %v748 = vpop.f32.mrf.mxu0
      %v749 = vpop.f32.mrf.mxu0
      %v750 = vadd.f32 0.0, %v749
      %v751 = vpop.f32.mrf.mxu0
      %752 = vmatprep.mubr.bf16.mxu0 0
      %753 = vmatmul.mubr.bf16.gmra.mxu0 %v696
      %v754 = vpop.f32.mrf.mxu0
      %v755 = vadd.f32 0.0, %v754
      %v756 = vpop.f32.mrf.mxu0
      %v757 = vpop.f32.mrf.mxu0
      %v758 = vadd.f32 0.0, %v757
      %v759 = vpop.f32.mrf.mxu0
      %760 = vmatprep.mubr.bf16.mxu0 0
      %761 = vmatmul.mubr.bf16.gmra.mxu0 %v699
      %v762 = vpop.f32.mrf.mxu0
      %v763 = vadd.f32 0.0, %v762
      %v764 = vpop.f32.mrf.mxu0
      %v765 = vpop.f32.mrf.mxu0
      %v766 = vadd.f32 0.0, %v765
      %v767 = vpop.f32.mrf.mxu0
      %768 = vdwg.mxu0
      %v769 = vadd.f32 %v648, %v739
      %v770 = vadd.f32 %v649, %v742
      %v771 = vadd.f32 %v650, %v747
      %v772 = vadd.f32 %v651, %v750
      %v773 = vadd.f32 %v652, %v755
      %v774 = vadd.f32 %v653, %v758
      %v775 = vadd.f32 %v654, %v763
      %v776 = vadd.f32 %v655, %v766
      %s777 = sadd.s32 %s196, 54
      %s778 = smul.addr %s777, 4
      %s779 = scalar_lea.vmem %s183, %s778
      %v780 = vld [vmem:[%s779] sm:$0xf]
      %v781 = vld [vmem:[%s779 + $0x8] sm:$0xf]
      %v782 = vld [vmem:[%s779 + $0x10] sm:$0xf]
      %v783 = vld [vmem:[%s779 + $0x18] sm:$0xf]
      %v784 = vld [vmem:[%s779 + $0x20] sm:$0xf]
      %v785 = vld [vmem:[%s779 + $0x28] sm:$0xf]
      %v786 = vld [vmem:[%s779 + $0x30] sm:$0xf]
      %v787 = vld [vmem:[%s779 + $0x38] sm:$0xf]
      %s788 = scalar_lea.vmem %s1, 8
      %v789 = vld [vmem:[%s788] sm:$0x3]
      %v798 = vunpack.c.l.b16 %v780
      %v799 = vunpack.c.l.b16 %v781
      %v800 = vunpack.c.l.b16 %v782
      %v801 = vunpack.c.l.b16 %v783
      %v802 = vunpack.c.l.b16 %v784
      %v803 = vunpack.c.l.b16 %v785
      %v804 = vunpack.c.l.b16 %v786
      %v805 = vunpack.c.l.b16 %v787
      %v806 = vpack.c.b16 %v799, %v798
      %v807 = vpack.c.b16 %v801, %v800
      %v808 = vpack.c.b16 %v803, %v802
      %v809 = vpack.c.b16 %v805, %v804
      %v811 = vsel %vm241, %v806, 0
      %v814 = vsel %vm241, %v807, 0
      %v817 = vsel %vm241, %v808, 0
      %v820 = vsel %vm241, %v809, 0
      %v823 = vsel %vm254, %v789, 0
      %825 = vmatprep.subr.bf16.mxu0 0
      %826 = vmatpush1.bf16.msra.mxu0 0
      %827 = vmatprep.subr.bf16.mxu0 0
      %828 = vmatpush1.bf16.msra.mxu0 0
      %829 = vmatprep.subr.bf16.mxu0 0
      %830 = vmatpush1.bf16.msra.mxu0 0
      %831 = vmatprep.subr.bf16.mxu0 0
      %832 = vmatpush1.bf16.msra.mxu0 0
      %833 = vmatprep.subr.bf16.mxu0 0
      %834 = vmatpush1.bf16.msra.mxu0 0
      %835 = vmatprep.subr.bf16.mxu0 0
      %836 = vmatpush1.bf16.msra.mxu0 0
      %837 = vmatprep.subr.bf16.mxu0 0
      %838 = vmatpush1.bf16.msra.mxu0 0
      %839 = vmatprep.subr.bf16.mxu0 0
      %840 = vmatpush1.bf16.msra.mxu0 %v823
      %841 = vmatprep.subr.bf16.mxu0 0
      %842 = vmatpush2.bf16.msra.mxu0 0
      %843 = vmatprep.subr.bf16.mxu0 0
      %844 = vmatpush2.bf16.msra.mxu0 0
      %845 = vmatprep.subr.bf16.mxu0 0
      %846 = vmatpush2.bf16.msra.mxu0 0
      %847 = vmatprep.subr.bf16.mxu0 0
      %848 = vmatpush2.bf16.msra.mxu0 0
      %849 = vmatprep.subr.bf16.mxu0 0
      %850 = vmatpush2.bf16.msra.mxu0 0
      %851 = vmatprep.subr.bf16.mxu0 0
      %852 = vmatpush2.bf16.msra.mxu0 0
      %853 = vmatprep.subr.bf16.mxu0 0
      %854 = vmatpush2.bf16.msra.mxu0 0
      %855 = vmatprep.subr.bf16.mxu0 0
      %856 = vmatpush2.bf16.msra.mxu0 0
      %857 = vmatprep.mubr.bf16.mxu0 0
      %858 = vmatmul.mubr.bf16.gmra.mxu0 %v811
      %v859 = vpop.f32.mrf.mxu0
      %v860 = vadd.f32 0.0, %v859
      %v861 = vpop.f32.mrf.mxu0
      %v862 = vpop.f32.mrf.mxu0
      %v863 = vadd.f32 0.0, %v862
      %v864 = vpop.f32.mrf.mxu0
      %865 = vmatprep.mubr.bf16.mxu0 0
      %866 = vmatmul.mubr.bf16.gmra.mxu0 %v814
      %v867 = vpop.f32.mrf.mxu0
      %v868 = vadd.f32 0.0, %v867
      %v869 = vpop.f32.mrf.mxu0
      %v870 = vpop.f32.mrf.mxu0
      %v871 = vadd.f32 0.0, %v870
      %v872 = vpop.f32.mrf.mxu0
      %873 = vmatprep.mubr.bf16.mxu0 0
      %874 = vmatmul.mubr.bf16.gmra.mxu0 %v817
      %v875 = vpop.f32.mrf.mxu0
      %v876 = vadd.f32 0.0, %v875
      %v877 = vpop.f32.mrf.mxu0
      %v878 = vpop.f32.mrf.mxu0
      %v879 = vadd.f32 0.0, %v878
      %v880 = vpop.f32.mrf.mxu0
      %881 = vmatprep.mubr.bf16.mxu0 0
      %882 = vmatmul.mubr.bf16.gmra.mxu0 %v820
      %v883 = vpop.f32.mrf.mxu0
      %v884 = vadd.f32 0.0, %v883
      %v885 = vpop.f32.mrf.mxu0
      %v886 = vpop.f32.mrf.mxu0
      %v887 = vadd.f32 0.0, %v886
      %v888 = vpop.f32.mrf.mxu0
      %889 = vdwg.mxu0
      %v890 = vadd.f32 %v769, %v860
      %v891 = vadd.f32 %v770, %v863
      %v892 = vadd.f32 %v771, %v868
      %v893 = vadd.f32 %v772, %v871
      %v894 = vadd.f32 %v773, %v876
      %v895 = vadd.f32 %v774, %v879
      %v896 = vadd.f32 %v775, %v884
      %v897 = vadd.f32 %v776, %v887
      %v898 = vld [vmem:[%s658] sm:$0xf]
      %v899 = vld [vmem:[%s658 + $0x4] sm:$0x1]
      %v900 = vld [vmem:[%s658 + $0x8] sm:$0xf]
      %v901 = vld [vmem:[%s658 + $0xc] sm:$0x1]
      %v902 = vld [vmem:[%s658 + $0x10] sm:$0xf]
      %v903 = vld [vmem:[%s658 + $0x14] sm:$0x1]
      %v904 = vld [vmem:[%s658 + $0x18] sm:$0xf]
      %v905 = vld [vmem:[%s658 + $0x1c] sm:$0x1]
      %v906 = vld [vmem:[%s658 + $0x20] sm:$0xf]
      %v907 = vld [vmem:[%s658 + $0x24] sm:$0x1]
      %v908 = vld [vmem:[%s658 + $0x28] sm:$0xf]
      %v909 = vld [vmem:[%s658 + $0x2c] sm:$0x1]
      %v910 = vld [vmem:[%s658 + $0x30] sm:$0xf]
      %v911 = vld [vmem:[%s658 + $0x34] sm:$0x1]
      %v912 = vld [vmem:[%s658 + $0x38] sm:$0xf]
      %v913 = vld [vmem:[%s658 + $0x3c] sm:$0x1]
      %v915 = vshrl.u32 %v898, 16
      %v917 = vrot.slane %v915, 4
      %v918 = vshll.u32 %v898, 16
      %v920 = vrot.slane %v918, 5
      %v921 = vor.u32 %v917, %v920
      %v922 = vrot.slane %v921, 4
      %v924 = vshll.u32 %v899, 16
      %v926 = vrot.slane %v924, 5
      %v927 = vsel %vm441, %v922, %v926
      %v929 = vshrl.u32 %v900, 16
      %v931 = vrot.slane %v929, 4
      %v932 = vshll.u32 %v900, 16
      %v934 = vrot.slane %v932, 5
      %v935 = vor.u32 %v931, %v934
      %v936 = vrot.slane %v935, 4
      %v938 = vshll.u32 %v901, 16
      %v940 = vrot.slane %v938, 5
      %v941 = vsel %vm441, %v936, %v940
      %v943 = vshrl.u32 %v902, 16
      %v945 = vrot.slane %v943, 4
      %v946 = vshll.u32 %v902, 16
      %v948 = vrot.slane %v946, 5
      %v949 = vor.u32 %v945, %v948
      %v950 = vrot.slane %v949, 4
      %v952 = vshll.u32 %v903, 16
      %v954 = vrot.slane %v952, 5
      %v955 = vsel %vm441, %v950, %v954
      %v957 = vshrl.u32 %v904, 16
      %v959 = vrot.slane %v957, 4
      %v960 = vshll.u32 %v904, 16
      %v962 = vrot.slane %v960, 5
      %v963 = vor.u32 %v959, %v962
      %v964 = vrot.slane %v963, 4
      %v966 = vshll.u32 %v905, 16
      %v968 = vrot.slane %v966, 5
      %v969 = vsel %vm441, %v964, %v968
      %v971 = vshrl.u32 %v906, 16
      %v973 = vrot.slane %v971, 4
      %v974 = vshll.u32 %v906, 16
      %v976 = vrot.slane %v974, 5
      %v977 = vor.u32 %v973, %v976
      %v978 = vrot.slane %v977, 4
      %v980 = vshll.u32 %v907, 16
      %v982 = vrot.slane %v980, 5
      %v983 = vsel %vm441, %v978, %v982
      %v985 = vshrl.u32 %v908, 16
      %v987 = vrot.slane %v985, 4
      %v988 = vshll.u32 %v908, 16
      %v990 = vrot.slane %v988, 5
      %v991 = vor.u32 %v987, %v990
      %v992 = vrot.slane %v991, 4
      %v994 = vshll.u32 %v909, 16
      %v996 = vrot.slane %v994, 5
      %v997 = vsel %vm441, %v992, %v996
      %v999 = vshrl.u32 %v910, 16
      %v1001 = vrot.slane %v999, 4
      %v1002 = vshll.u32 %v910, 16
      %v1004 = vrot.slane %v1002, 5
      %v1005 = vor.u32 %v1001, %v1004
      %v1006 = vrot.slane %v1005, 4
      %v1008 = vshll.u32 %v911, 16
      %v1010 = vrot.slane %v1008, 5
      %v1011 = vsel %vm441, %v1006, %v1010
      %v1013 = vshrl.u32 %v912, 16
      %v1015 = vrot.slane %v1013, 4
      %v1016 = vshll.u32 %v912, 16
      %v1018 = vrot.slane %v1016, 5
      %v1019 = vor.u32 %v1015, %v1018
      %v1020 = vrot.slane %v1019, 4
      %v1022 = vshll.u32 %v913, 16
      %v1024 = vrot.slane %v1022, 5
      %v1025 = vsel %vm441, %v1020, %v1024
      %s1026 = scalar_lea.vmem %s1, 10
      %v1027 = vld [vmem:[%s1026] sm:$0x3]
      %v1028 = vunpack.c.l.b16 %v927
      %v1029 = vunpack.c.l.b16 %v941
      %v1030 = vunpack.c.l.b16 %v955
      %v1031 = vunpack.c.l.b16 %v969
      %v1032 = vunpack.c.l.b16 %v983
      %v1033 = vunpack.c.l.b16 %v997
      %v1034 = vunpack.c.l.b16 %v1011
      %v1035 = vunpack.c.l.b16 %v1025
      %v1036 = vpack.c.b16 %v1029, %v1028
      %v1037 = vpack.c.b16 %v1031, %v1030
      %v1038 = vpack.c.b16 %v1033, %v1032
      %v1039 = vpack.c.b16 %v1035, %v1034
      %v1041 = vsel %vm241, %v1036, 0
      %v1044 = vsel %vm241, %v1037, 0
      %v1047 = vsel %vm241, %v1038, 0
      %v1050 = vsel %vm241, %v1039, 0
      %v1053 = vsel %vm254, %v1027, 0
      %1055 = vmatprep.subr.bf16.mxu0 0
      %1056 = vmatpush1.bf16.msra.mxu0 0
      %1057 = vmatprep.subr.bf16.mxu0 0
      %1058 = vmatpush1.bf16.msra.mxu0 0
      %1059 = vmatprep.subr.bf16.mxu0 0
      %1060 = vmatpush1.bf16.msra.mxu0 0
      %1061 = vmatprep.subr.bf16.mxu0 0
      %1062 = vmatpush1.bf16.msra.mxu0 0
      %1063 = vmatprep.subr.bf16.mxu0 0
      %1064 = vmatpush1.bf16.msra.mxu0 0
      %1065 = vmatprep.subr.bf16.mxu0 0
      %1066 = vmatpush1.bf16.msra.mxu0 0
      %1067 = vmatprep.subr.bf16.mxu0 0
      %1068 = vmatpush1.bf16.msra.mxu0 0
      %1069 = vmatprep.subr.bf16.mxu0 0
      %1070 = vmatpush1.bf16.msra.mxu0 %v1053
      %1071 = vmatprep.subr.bf16.mxu0 0
      %1072 = vmatpush2.bf16.msra.mxu0 0
      %1073 = vmatprep.subr.bf16.mxu0 0
      %1074 = vmatpush2.bf16.msra.mxu0 0
      %1075 = vmatprep.subr.bf16.mxu0 0
      %1076 = vmatpush2.bf16.msra.mxu0 0
      %1077 = vmatprep.subr.bf16.mxu0 0
      %1078 = vmatpush2.bf16.msra.mxu0 0
      %1079 = vmatprep.subr.bf16.mxu0 0
      %1080 = vmatpush2.bf16.msra.mxu0 0
      %1081 = vmatprep.subr.bf16.mxu0 0
      %1082 = vmatpush2.bf16.msra.mxu0 0
      %1083 = vmatprep.subr.bf16.mxu0 0
      %1084 = vmatpush2.bf16.msra.mxu0 0
      %1085 = vmatprep.subr.bf16.mxu0 0
      %1086 = vmatpush2.bf16.msra.mxu0 0
      %1087 = vmatprep.mubr.bf16.mxu0 0
      %1088 = vmatmul.mubr.bf16.gmra.mxu0 %v1041
      %v1089 = vpop.f32.mrf.mxu0
      %v1090 = vadd.f32 0.0, %v1089
      %v1091 = vpop.f32.mrf.mxu0
      %v1092 = vpop.f32.mrf.mxu0
      %v1093 = vadd.f32 0.0, %v1092
      %v1094 = vpop.f32.mrf.mxu0
      %1095 = vmatprep.mubr.bf16.mxu0 0
      %1096 = vmatmul.mubr.bf16.gmra.mxu0 %v1044
      %v1097 = vpop.f32.mrf.mxu0
      %v1098 = vadd.f32 0.0, %v1097
      %v1099 = vpop.f32.mrf.mxu0
      %v1100 = vpop.f32.mrf.mxu0
      %v1101 = vadd.f32 0.0, %v1100
      %v1102 = vpop.f32.mrf.mxu0
      %1103 = vmatprep.mubr.bf16.mxu0 0
      %1104 = vmatmul.mubr.bf16.gmra.mxu0 %v1047
      %v1105 = vpop.f32.mrf.mxu0
      %v1106 = vadd.f32 0.0, %v1105
      %v1107 = vpop.f32.mrf.mxu0
      %v1108 = vpop.f32.mrf.mxu0
      %v1109 = vadd.f32 0.0, %v1108
      %v1110 = vpop.f32.mrf.mxu0
      %1111 = vmatprep.mubr.bf16.mxu0 0
      %1112 = vmatmul.mubr.bf16.gmra.mxu0 %v1050
      %v1113 = vpop.f32.mrf.mxu0
      %v1114 = vadd.f32 0.0, %v1113
      %v1115 = vpop.f32.mrf.mxu0
      %v1116 = vpop.f32.mrf.mxu0
      %v1117 = vadd.f32 0.0, %v1116
      %v1118 = vpop.f32.mrf.mxu0
      %1119 = vdwg.mxu0
      %v1120 = vadd.f32 %v890, %v1090
      %v1121 = vadd.f32 %v891, %v1093
      %v1122 = vadd.f32 %v892, %v1098
      %v1123 = vadd.f32 %v893, %v1101
      %v1124 = vadd.f32 %v894, %v1106
      %v1125 = vadd.f32 %v895, %v1109
      %v1126 = vadd.f32 %v896, %v1114
      %v1127 = vadd.f32 %v897, %v1117
      %s1128 = sadd.s32 %s195, 1
      %s1129 = smul.u32 %s1128, 2
      %s1130 = smul.addr %s1129, 4
      %s1131 = scalar_lea.vmem %s183, %s1130
      %v1132 = vld [vmem:[%s1131] sm:$0xf]
      %v1133 = vld [vmem:[%s1131 + $0x8] sm:$0xf]
      %v1134 = vld [vmem:[%s1131 + $0x10] sm:$0xf]
      %v1135 = vld [vmem:[%s1131 + $0x18] sm:$0xf]
      %v1136 = vld [vmem:[%s1131 + $0x20] sm:$0xf]
      %v1137 = vld [vmem:[%s1131 + $0x28] sm:$0xf]
      %v1138 = vld [vmem:[%s1131 + $0x30] sm:$0xf]
      %v1139 = vld [vmem:[%s1131 + $0x38] sm:$0xf]
      %s1140 = scalar_lea.vmem %s1, 12
      %v1141 = vld [vmem:[%s1140] sm:$0x3]
      %v1150 = vunpack.c.l.b16 %v1132
      %v1151 = vunpack.c.l.b16 %v1133
      %v1152 = vunpack.c.l.b16 %v1134
      %v1153 = vunpack.c.l.b16 %v1135
      %v1154 = vunpack.c.l.b16 %v1136
      %v1155 = vunpack.c.l.b16 %v1137
      %v1156 = vunpack.c.l.b16 %v1138
      %v1157 = vunpack.c.l.b16 %v1139
      %v1158 = vpack.c.b16 %v1151, %v1150
      %v1159 = vpack.c.b16 %v1153, %v1152
      %v1160 = vpack.c.b16 %v1155, %v1154
      %v1161 = vpack.c.b16 %v1157, %v1156
      %v1163 = vsel %vm241, %v1158, 0
      %v1166 = vsel %vm241, %v1159, 0
      %v1169 = vsel %vm241, %v1160, 0
      %v1172 = vsel %vm241, %v1161, 0
      %v1175 = vsel %vm254, %v1141, 0
      %1177 = vmatprep.subr.bf16.mxu0 0
      %1178 = vmatpush1.bf16.msra.mxu0 0
      %1179 = vmatprep.subr.bf16.mxu0 0
      %1180 = vmatpush1.bf16.msra.mxu0 0
      %1181 = vmatprep.subr.bf16.mxu0 0
      %1182 = vmatpush1.bf16.msra.mxu0 0
      %1183 = vmatprep.subr.bf16.mxu0 0
      %1184 = vmatpush1.bf16.msra.mxu0 0
      %1185 = vmatprep.subr.bf16.mxu0 0
      %1186 = vmatpush1.bf16.msra.mxu0 0
      %1187 = vmatprep.subr.bf16.mxu0 0
      %1188 = vmatpush1.bf16.msra.mxu0 0
      %1189 = vmatprep.subr.bf16.mxu0 0
      %1190 = vmatpush1.bf16.msra.mxu0 0
      %1191 = vmatprep.subr.bf16.mxu0 0
      %1192 = vmatpush1.bf16.msra.mxu0 %v1175
      %1193 = vmatprep.subr.bf16.mxu0 0
      %1194 = vmatpush2.bf16.msra.mxu0 0
      %1195 = vmatprep.subr.bf16.mxu0 0
      %1196 = vmatpush2.bf16.msra.mxu0 0
      %1197 = vmatprep.subr.bf16.mxu0 0
      %1198 = vmatpush2.bf16.msra.mxu0 0
      %1199 = vmatprep.subr.bf16.mxu0 0
      %1200 = vmatpush2.bf16.msra.mxu0 0
      %1201 = vmatprep.subr.bf16.mxu0 0
      %1202 = vmatpush2.bf16.msra.mxu0 0
      %1203 = vmatprep.subr.bf16.mxu0 0
      %1204 = vmatpush2.bf16.msra.mxu0 0
      %1205 = vmatprep.subr.bf16.mxu0 0
      %1206 = vmatpush2.bf16.msra.mxu0 0
      %1207 = vmatprep.subr.bf16.mxu0 0
      %1208 = vmatpush2.bf16.msra.mxu0 0
      %1209 = vmatprep.mubr.bf16.mxu0 0
      %1210 = vmatmul.mubr.bf16.gmra.mxu0 %v1163
      %v1211 = vpop.f32.mrf.mxu0
      %v1212 = vadd.f32 0.0, %v1211
      %v1213 = vpop.f32.mrf.mxu0
      %v1214 = vpop.f32.mrf.mxu0
      %v1215 = vadd.f32 0.0, %v1214
      %v1216 = vpop.f32.mrf.mxu0
      %1217 = vmatprep.mubr.bf16.mxu0 0
      %1218 = vmatmul.mubr.bf16.gmra.mxu0 %v1166
      %v1219 = vpop.f32.mrf.mxu0
      %v1220 = vadd.f32 0.0, %v1219
      %v1221 = vpop.f32.mrf.mxu0
      %v1222 = vpop.f32.mrf.mxu0
      %v1223 = vadd.f32 0.0, %v1222
      %v1224 = vpop.f32.mrf.mxu0
      %1225 = vmatprep.mubr.bf16.mxu0 0
      %1226 = vmatmul.mubr.bf16.gmra.mxu0 %v1169
      %v1227 = vpop.f32.mrf.mxu0
      %v1228 = vadd.f32 0.0, %v1227
      %v1229 = vpop.f32.mrf.mxu0
      %v1230 = vpop.f32.mrf.mxu0
      %v1231 = vadd.f32 0.0, %v1230
      %v1232 = vpop.f32.mrf.mxu0
      %1233 = vmatprep.mubr.bf16.mxu0 0
      %1234 = vmatmul.mubr.bf16.gmra.mxu0 %v1172
      %v1235 = vpop.f32.mrf.mxu0
      %v1236 = vadd.f32 0.0, %v1235
      %v1237 = vpop.f32.mrf.mxu0
      %v1238 = vpop.f32.mrf.mxu0
      %v1239 = vadd.f32 0.0, %v1238
      %v1240 = vpop.f32.mrf.mxu0
      %1241 = vdwg.mxu0
      %v1242 = vadd.f32 %v1120, %v1212
      %v1243 = vadd.f32 %v1121, %v1215
      %v1244 = vadd.f32 %v1122, %v1220
      %v1245 = vadd.f32 %v1123, %v1223
      %v1246 = vadd.f32 %v1124, %v1228
      %v1247 = vadd.f32 %v1125, %v1231
      %v1248 = vadd.f32 %v1126, %v1236
      %v1249 = vadd.f32 %v1127, %v1239
      %s1250 = sadd.s32 %s1129, 18
      %s1251 = smul.addr %s1250, 4
      %s1252 = scalar_lea.vmem %s183, %s1251
      %v1253 = vld [vmem:[%s1252] sm:$0xf]
      %v1254 = vld [vmem:[%s1252 + $0x8] sm:$0xf]
      %v1255 = vld [vmem:[%s1252 + $0x10] sm:$0xf]
      %v1256 = vld [vmem:[%s1252 + $0x18] sm:$0xf]
      %v1257 = vld [vmem:[%s1252 + $0x20] sm:$0xf]
      %v1258 = vld [vmem:[%s1252 + $0x28] sm:$0xf]
      %v1259 = vld [vmem:[%s1252 + $0x30] sm:$0xf]
      %v1260 = vld [vmem:[%s1252 + $0x38] sm:$0xf]
      %s1261 = scalar_lea.vmem %s1, 14
      %v1262 = vld [vmem:[%s1261] sm:$0x3]
      %v1271 = vunpack.c.l.b16 %v1253
      %v1272 = vunpack.c.l.b16 %v1254
      %v1273 = vunpack.c.l.b16 %v1255
      %v1274 = vunpack.c.l.b16 %v1256
      %v1275 = vunpack.c.l.b16 %v1257
      %v1276 = vunpack.c.l.b16 %v1258
      %v1277 = vunpack.c.l.b16 %v1259
      %v1278 = vunpack.c.l.b16 %v1260
      %v1279 = vpack.c.b16 %v1272, %v1271
      %v1280 = vpack.c.b16 %v1274, %v1273
      %v1281 = vpack.c.b16 %v1276, %v1275
      %v1282 = vpack.c.b16 %v1278, %v1277
      %v1284 = vsel %vm241, %v1279, 0
      %v1287 = vsel %vm241, %v1280, 0
      %v1290 = vsel %vm241, %v1281, 0
      %v1293 = vsel %vm241, %v1282, 0
      %v1296 = vsel %vm254, %v1262, 0
      %1298 = vmatprep.subr.bf16.mxu0 0
      %1299 = vmatpush1.bf16.msra.mxu0 0
      %1300 = vmatprep.subr.bf16.mxu0 0
      %1301 = vmatpush1.bf16.msra.mxu0 0
      %1302 = vmatprep.subr.bf16.mxu0 0
      %1303 = vmatpush1.bf16.msra.mxu0 0
      %1304 = vmatprep.subr.bf16.mxu0 0
      %1305 = vmatpush1.bf16.msra.mxu0 0
      %1306 = vmatprep.subr.bf16.mxu0 0
      %1307 = vmatpush1.bf16.msra.mxu0 0
      %1308 = vmatprep.subr.bf16.mxu0 0
      %1309 = vmatpush1.bf16.msra.mxu0 0
      %1310 = vmatprep.subr.bf16.mxu0 0
      %1311 = vmatpush1.bf16.msra.mxu0 0
      %1312 = vmatprep.subr.bf16.mxu0 0
      %1313 = vmatpush1.bf16.msra.mxu0 %v1296
      %1314 = vmatprep.subr.bf16.mxu0 0
      %1315 = vmatpush2.bf16.msra.mxu0 0
      %1316 = vmatprep.subr.bf16.mxu0 0
      %1317 = vmatpush2.bf16.msra.mxu0 0
      %1318 = vmatprep.subr.bf16.mxu0 0
      %1319 = vmatpush2.bf16.msra.mxu0 0
      %1320 = vmatprep.subr.bf16.mxu0 0
      %1321 = vmatpush2.bf16.msra.mxu0 0
      %1322 = vmatprep.subr.bf16.mxu0 0
      %1323 = vmatpush2.bf16.msra.mxu0 0
      %1324 = vmatprep.subr.bf16.mxu0 0
      %1325 = vmatpush2.bf16.msra.mxu0 0
      %1326 = vmatprep.subr.bf16.mxu0 0
      %1327 = vmatpush2.bf16.msra.mxu0 0
      %1328 = vmatprep.subr.bf16.mxu0 0
      %1329 = vmatpush2.bf16.msra.mxu0 0
      %1330 = vmatprep.mubr.bf16.mxu0 0
      %1331 = vmatmul.mubr.bf16.gmra.mxu0 %v1284
      %v1332 = vpop.f32.mrf.mxu0
      %v1333 = vadd.f32 0.0, %v1332
      %v1334 = vpop.f32.mrf.mxu0
      %v1335 = vpop.f32.mrf.mxu0
      %v1336 = vadd.f32 0.0, %v1335
      %v1337 = vpop.f32.mrf.mxu0
      %1338 = vmatprep.mubr.bf16.mxu0 0
      %1339 = vmatmul.mubr.bf16.gmra.mxu0 %v1287
      %v1340 = vpop.f32.mrf.mxu0
      %v1341 = vadd.f32 0.0, %v1340
      %v1342 = vpop.f32.mrf.mxu0
      %v1343 = vpop.f32.mrf.mxu0
      %v1344 = vadd.f32 0.0, %v1343
      %v1345 = vpop.f32.mrf.mxu0
      %1346 = vmatprep.mubr.bf16.mxu0 0
      %1347 = vmatmul.mubr.bf16.gmra.mxu0 %v1290
      %v1348 = vpop.f32.mrf.mxu0
      %v1349 = vadd.f32 0.0, %v1348
      %v1350 = vpop.f32.mrf.mxu0
      %v1351 = vpop.f32.mrf.mxu0
      %v1352 = vadd.f32 0.0, %v1351
      %v1353 = vpop.f32.mrf.mxu0
      %1354 = vmatprep.mubr.bf16.mxu0 0
      %1355 = vmatmul.mubr.bf16.gmra.mxu0 %v1293
      %v1356 = vpop.f32.mrf.mxu0
      %v1357 = vadd.f32 0.0, %v1356
      %v1358 = vpop.f32.mrf.mxu0
      %v1359 = vpop.f32.mrf.mxu0
      %v1360 = vadd.f32 0.0, %v1359
      %v1361 = vpop.f32.mrf.mxu0
      %1362 = vdwg.mxu0
      %v1363 = vadd.f32 %v1242, %v1333
      %v1364 = vadd.f32 %v1243, %v1336
      %v1365 = vadd.f32 %v1244, %v1341
      %v1366 = vadd.f32 %v1245, %v1344
      %v1367 = vadd.f32 %v1246, %v1349
      %v1368 = vadd.f32 %v1247, %v1352
      %v1369 = vadd.f32 %v1248, %v1357
      %v1370 = vadd.f32 %v1249, %v1360
      %v1371 = vld [vmem:[%s1131] sm:$0xf]
      %v1372 = vld [vmem:[%s1131 + $0x4] sm:$0x1]
      %v1373 = vld [vmem:[%s1131 + $0x8] sm:$0xf]
      %v1374 = vld [vmem:[%s1131 + $0xc] sm:$0x1]
      %v1375 = vld [vmem:[%s1131 + $0x10] sm:$0xf]
      %v1376 = vld [vmem:[%s1131 + $0x14] sm:$0x1]
      %v1377 = vld [vmem:[%s1131 + $0x18] sm:$0xf]
      %v1378 = vld [vmem:[%s1131 + $0x1c] sm:$0x1]
      %v1379 = vld [vmem:[%s1131 + $0x20] sm:$0xf]
      %v1380 = vld [vmem:[%s1131 + $0x24] sm:$0x1]
      %v1381 = vld [vmem:[%s1131 + $0x28] sm:$0xf]
      %v1382 = vld [vmem:[%s1131 + $0x2c] sm:$0x1]
      %v1383 = vld [vmem:[%s1131 + $0x30] sm:$0xf]
      %v1384 = vld [vmem:[%s1131 + $0x34] sm:$0x1]
      %v1385 = vld [vmem:[%s1131 + $0x38] sm:$0xf]
      %v1386 = vld [vmem:[%s1131 + $0x3c] sm:$0x1]
      %v1388 = vshrl.u32 %v1371, 16
      %v1390 = vrot.slane %v1388, 4
      %v1391 = vshll.u32 %v1371, 16
      %v1393 = vrot.slane %v1391, 5
      %v1394 = vor.u32 %v1390, %v1393
      %v1395 = vrot.slane %v1394, 4
      %v1397 = vshll.u32 %v1372, 16
      %v1399 = vrot.slane %v1397, 5
      %v1400 = vsel %vm441, %v1395, %v1399
      %v1402 = vshrl.u32 %v1373, 16
      %v1404 = vrot.slane %v1402, 4
      %v1405 = vshll.u32 %v1373, 16
      %v1407 = vrot.slane %v1405, 5
      %v1408 = vor.u32 %v1404, %v1407
      %v1409 = vrot.slane %v1408, 4
      %v1411 = vshll.u32 %v1374, 16
      %v1413 = vrot.slane %v1411, 5
      %v1414 = vsel %vm441, %v1409, %v1413
      %v1416 = vshrl.u32 %v1375, 16
      %v1418 = vrot.slane %v1416, 4
      %v1419 = vshll.u32 %v1375, 16
      %v1421 = vrot.slane %v1419, 5
      %v1422 = vor.u32 %v1418, %v1421
      %v1423 = vrot.slane %v1422, 4
      %v1425 = vshll.u32 %v1376, 16
      %v1427 = vrot.slane %v1425, 5
      %v1428 = vsel %vm441, %v1423, %v1427
      %v1430 = vshrl.u32 %v1377, 16
      %v1432 = vrot.slane %v1430, 4
      %v1433 = vshll.u32 %v1377, 16
      %v1435 = vrot.slane %v1433, 5
      %v1436 = vor.u32 %v1432, %v1435
      %v1437 = vrot.slane %v1436, 4
      %v1439 = vshll.u32 %v1378, 16
      %v1441 = vrot.slane %v1439, 5
      %v1442 = vsel %vm441, %v1437, %v1441
      %v1444 = vshrl.u32 %v1379, 16
      %v1446 = vrot.slane %v1444, 4
      %v1447 = vshll.u32 %v1379, 16
      %v1449 = vrot.slane %v1447, 5
      %v1450 = vor.u32 %v1446, %v1449
      %v1451 = vrot.slane %v1450, 4
      %v1453 = vshll.u32 %v1380, 16
      %v1455 = vrot.slane %v1453, 5
      %v1456 = vsel %vm441, %v1451, %v1455
      %v1458 = vshrl.u32 %v1381, 16
      %v1460 = vrot.slane %v1458, 4
      %v1461 = vshll.u32 %v1381, 16
      %v1463 = vrot.slane %v1461, 5
      %v1464 = vor.u32 %v1460, %v1463
      %v1465 = vrot.slane %v1464, 4
      %v1467 = vshll.u32 %v1382, 16
      %v1469 = vrot.slane %v1467, 5
      %v1470 = vsel %vm441, %v1465, %v1469
      %v1472 = vshrl.u32 %v1383, 16
      %v1474 = vrot.slane %v1472, 4
      %v1475 = vshll.u32 %v1383, 16
      %v1477 = vrot.slane %v1475, 5
      %v1478 = vor.u32 %v1474, %v1477
      %v1479 = vrot.slane %v1478, 4
      %v1481 = vshll.u32 %v1384, 16
      %v1483 = vrot.slane %v1481, 5
      %v1484 = vsel %vm441, %v1479, %v1483
      %v1486 = vshrl.u32 %v1385, 16
      %v1488 = vrot.slane %v1486, 4
      %v1489 = vshll.u32 %v1385, 16
      %v1491 = vrot.slane %v1489, 5
      %v1492 = vor.u32 %v1488, %v1491
      %v1493 = vrot.slane %v1492, 4
      %v1495 = vshll.u32 %v1386, 16
      %v1497 = vrot.slane %v1495, 5
      %v1498 = vsel %vm441, %v1493, %v1497
      %s1499 = scalar_lea.vmem %s1, 16
      %v1500 = vld [vmem:[%s1499] sm:$0x3]
      %v1501 = vunpack.c.l.b16 %v1400
      %v1502 = vunpack.c.l.b16 %v1414
      %v1503 = vunpack.c.l.b16 %v1428
      %v1504 = vunpack.c.l.b16 %v1442
      %v1505 = vunpack.c.l.b16 %v1456
      %v1506 = vunpack.c.l.b16 %v1470
      %v1507 = vunpack.c.l.b16 %v1484
      %v1508 = vunpack.c.l.b16 %v1498
      %v1509 = vpack.c.b16 %v1502, %v1501
      %v1510 = vpack.c.b16 %v1504, %v1503
      %v1511 = vpack.c.b16 %v1506, %v1505
      %v1512 = vpack.c.b16 %v1508, %v1507
      %v1514 = vsel %vm241, %v1509, 0
      %v1517 = vsel %vm241, %v1510, 0
      %v1520 = vsel %vm241, %v1511, 0
      %v1523 = vsel %vm241, %v1512, 0
      %v1526 = vsel %vm254, %v1500, 0
      %1528 = vmatprep.subr.bf16.mxu0 0
      %1529 = vmatpush1.bf16.msra.mxu0 0
      %1530 = vmatprep.subr.bf16.mxu0 0
      %1531 = vmatpush1.bf16.msra.mxu0 0
      %1532 = vmatprep.subr.bf16.mxu0 0
      %1533 = vmatpush1.bf16.msra.mxu0 0
      %1534 = vmatprep.subr.bf16.mxu0 0
      %1535 = vmatpush1.bf16.msra.mxu0 0
      %1536 = vmatprep.subr.bf16.mxu0 0
      %1537 = vmatpush1.bf16.msra.mxu0 0
      %1538 = vmatprep.subr.bf16.mxu0 0
      %1539 = vmatpush1.bf16.msra.mxu0 0
      %1540 = vmatprep.subr.bf16.mxu0 0
      %1541 = vmatpush1.bf16.msra.mxu0 0
      %1542 = vmatprep.subr.bf16.mxu0 0
      %1543 = vmatpush1.bf16.msra.mxu0 %v1526
      %1544 = vmatprep.subr.bf16.mxu0 0
      %1545 = vmatpush2.bf16.msra.mxu0 0
      %1546 = vmatprep.subr.bf16.mxu0 0
      %1547 = vmatpush2.bf16.msra.mxu0 0
      %1548 = vmatprep.subr.bf16.mxu0 0
      %1549 = vmatpush2.bf16.msra.mxu0 0
      %1550 = vmatprep.subr.bf16.mxu0 0
      %1551 = vmatpush2.bf16.msra.mxu0 0
      %1552 = vmatprep.subr.bf16.mxu0 0
      %1553 = vmatpush2.bf16.msra.mxu0 0
      %1554 = vmatprep.subr.bf16.mxu0 0
      %1555 = vmatpush2.bf16.msra.mxu0 0
      %1556 = vmatprep.subr.bf16.mxu0 0
      %1557 = vmatpush2.bf16.msra.mxu0 0
      %1558 = vmatprep.subr.bf16.mxu0 0
      %1559 = vmatpush2.bf16.msra.mxu0 0
      %1560 = vmatprep.mubr.bf16.mxu0 0
      %1561 = vmatmul.mubr.bf16.gmra.mxu0 %v1514
      %v1562 = vpop.f32.mrf.mxu0
      %v1563 = vadd.f32 0.0, %v1562
      %v1564 = vpop.f32.mrf.mxu0
      %v1565 = vpop.f32.mrf.mxu0
      %v1566 = vadd.f32 0.0, %v1565
      %v1567 = vpop.f32.mrf.mxu0
      %1568 = vmatprep.mubr.bf16.mxu0 0
      %1569 = vmatmul.mubr.bf16.gmra.mxu0 %v1517
      %v1570 = vpop.f32.mrf.mxu0
      %v1571 = vadd.f32 0.0, %v1570
      %v1572 = vpop.f32.mrf.mxu0
      %v1573 = vpop.f32.mrf.mxu0
      %v1574 = vadd.f32 0.0, %v1573
      %v1575 = vpop.f32.mrf.mxu0
      %1576 = vmatprep.mubr.bf16.mxu0 0
      %1577 = vmatmul.mubr.bf16.gmra.mxu0 %v1520
      %v1578 = vpop.f32.mrf.mxu0
      %v1579 = vadd.f32 0.0, %v1578
      %v1580 = vpop.f32.mrf.mxu0
      %v1581 = vpop.f32.mrf.mxu0
      %v1582 = vadd.f32 0.0, %v1581
      %v1583 = vpop.f32.mrf.mxu0
      %1584 = vmatprep.mubr.bf16.mxu0 0
      %1585 = vmatmul.mubr.bf16.gmra.mxu0 %v1523
      %v1586 = vpop.f32.mrf.mxu0
      %v1587 = vadd.f32 0.0, %v1586
      %v1588 = vpop.f32.mrf.mxu0
      %v1589 = vpop.f32.mrf.mxu0
      %v1590 = vadd.f32 0.0, %v1589
      %v1591 = vpop.f32.mrf.mxu0
      %1592 = vdwg.mxu0
      %v1593 = vadd.f32 %v1363, %v1563
      %v1594 = vadd.f32 %v1364, %v1566
      %v1595 = vadd.f32 %v1365, %v1571
      %v1596 = vadd.f32 %v1366, %v1574
      %v1597 = vadd.f32 %v1367, %v1579
      %v1598 = vadd.f32 %v1368, %v1582
      %v1599 = vadd.f32 %v1369, %v1587
      %v1600 = vadd.f32 %v1370, %v1590
      %v1601 = vld [vmem:[%s2] sm:$0x1]
      %v1603 = vlaneseq
      %v1604 = vshrl.u32 %v1603, 7
      %v1605 = vsub.s32 0, %v1604
      %v1606 = vrot.slane %v1601, %v1605
      %v1608 = vadd.f32 %v1593, %v1606
      %v1609 = vadd.f32 %v1594, %v1606
      %v1610 = vadd.f32 %v1595, %v1606
      %v1611 = vadd.f32 %v1596, %v1606
      %v1612 = vadd.f32 %v1597, %v1606
      %v1613 = vadd.f32 %v1598, %v1606
      %v1614 = vadd.f32 %v1599, %v1606
      %v1615 = vadd.f32 %v1600, %v1606
      %v1616 = vmax.f32 %v1608, 0.0
      %v1617 = vmax.f32 %v1609, 0.0
      %v1618 = vmax.f32 %v1610, 0.0
      %v1619 = vmax.f32 %v1611, 0.0
      %v1620 = vmax.f32 %v1612, 0.0
      %v1621 = vmax.f32 %v1613, 0.0
      %v1622 = vmax.f32 %v1614, 0.0
      %v1623 = vmax.f32 %v1615, 0.0
      %v1624 = vpack.c.bf16 %v1617, %v1616
      %v1625 = vpack.c.bf16 %v1619, %v1618
      %v1626 = vpack.c.bf16 %v1621, %v1620
      %v1627 = vpack.c.bf16 %v1623, %v1622
      %v1632 = vunpack.c.l.b16 %v1624
      %v1633 = vunpack.c.h.b16 %v1624
      %v1634 = vunpack.c.l.b16 %v1625
      %v1635 = vunpack.c.h.b16 %v1625
      %v1636 = vunpack.c.l.b16 %v1626
      %v1637 = vunpack.c.h.b16 %v1626
      %v1638 = vunpack.c.l.b16 %v1627
      %v1639 = vunpack.c.h.b16 %v1627
      %v1640 = vpack.c.b16 %v1632, %v1632
      %v1641 = vpack.c.b16 %v1633, %v1633
      %v1642 = vpack.c.b16 %v1634, %v1634
      %v1643 = vpack.c.b16 %v1635, %v1635
      %v1644 = vpack.c.b16 %v1636, %v1636
      %v1645 = vpack.c.b16 %v1637, %v1637
      %v1646 = vpack.c.b16 %v1638, %v1638
      %v1647 = vpack.c.b16 %v1639, %v1639
      %vm1656 = vcmask 60416
      %1657 = vst.msk [vmem:[%s192] sm:$0xf] %vm1656, %v1640
      %1658 = vst.msk [vmem:[%s192 + $0x4] sm:$0xf] %vm1656, %v1641
      %1659 = vst.msk [vmem:[%s192 + $0x8] sm:$0xf] %vm1656, %v1642
      %1660 = vst.msk [vmem:[%s192 + $0xc] sm:$0xf] %vm1656, %v1643
      %1661 = vst.msk [vmem:[%s192 + $0x10] sm:$0xf] %vm1656, %v1644
      %1662 = vst.msk [vmem:[%s192 + $0x14] sm:$0xf] %vm1656, %v1645
      %1663 = vst.msk [vmem:[%s192 + $0x18] sm:$0xf] %vm1656, %v1646
      %1664 = vst.msk [vmem:[%s192 + $0x1c] sm:$0xf] %vm1656, %v1647
      %s1665 = smul.u32 8, %s19
      %p1666 = scmp.lt.s32.totalorder %s18, 1
      %s1667 = scalar_select %p1666, %s18, 1
      %p1668 = scmp.lt.s32.totalorder %s1665, 7
      %s1669 = scalar_select %p1668, %s1665, 7
      %s1670 = smul.addr %s1667, 8
      %s1671 = sadd.s32 %s1669, %s1670
      %s1672 = smul.addr %s1671, 4
      %s1673 = scalar_lea.vmem %s3, %s1672
      // Predicated region
      $region33: #{tpu_custom_call.1} parent=31 // pred_check
        %p1674 = pneg %p114
      $region34: #{tpu_custom_call.1} parent=31 // pred_check_branch
        %1676 = sbr.rel (%p1674) target = $region36
      $region35: #{tpu_custom_call.1} parent=31 // pred_region
        %s1677 = smul.u32 8, %s19
      $region36: #{tpu_custom_call.1} parent=31 // pred_fallthru
        _
    $region32: #{tpu_custom_call.1} parent=5 // pred_fallthru
      _
    %p1678 = scmp.le.s32.totalorder 2, %s9
    // Predicated region
    $region37: #{tpu_custom_call.1} parent=5 // pred_check
      %p1679 = pneg %p1678
    $region38: #{tpu_custom_call.1} parent=5 // pred_check_branch
      %1681 = sbr.rel (%p1679) target = $region40
    $region39: #{tpu_custom_call.1} parent=5 // pred_region
      %s1682 = ssub.s32 %s9, 2
      // Predicated region
      $region41: #{tpu_custom_call.1} parent=39 // pred_check
        %p1683 = pneg %p120
      $region42: #{tpu_custom_call.1} parent=39 // pred_check_branch
        %1685 = sbr.rel (%p1683) target = $region44
      $region43: #{tpu_custom_call.1} parent=39 // pred_region
        %s1686 = smul.u32 8, %s21
        %p1687 = scmp.lt.s32.totalorder %s20, 1
        %s1688 = scalar_select %p1687, %s20, 1
        %p1689 = scmp.lt.s32.totalorder %s1686, 7
        %s1690 = scalar_select %p1689, %s1686, 7
        %s1691 = smul.addr %s1688, 8
        %s1692 = sadd.s32 %s1690, %s1691
        %s1693 = smul.addr %s1692, 4
        %s1694 = scalar_lea.vmem %s3, %s1693
      $region44: #{tpu_custom_call.1} parent=39 // pred_fallthru
        _
    $region40: #{tpu_custom_call.1} parent=5 // pred_fallthru
      _
  $region6: #{tpu_custom_call.1} parent=0 // loop_footer
    %s13 = sadd.s32 1, %s9
  $region7: #{tpu_custom_call.1} parent=0 // loop_footer_branch
    %8 = sbr.rel target = $region3
  $region8: #{tpu_custom_call.1} parent=0 // loop_exit
    _

</llo_original>
